<compile_context>
chip_gen: v6e
topology: v6e:2x2x1
jax: 0.10.0
libtpu: 0.0.40
codegen_flags: <defaults>
</compile_context>

<pallas_src>
import functools

import jax
import jax.numpy as jnp
import numpy as np
from jax.experimental import pallas as pl
from jax.experimental.pallas import tpu as pltpu


def s2p2_kernel(x_ref, m_ref, w1_ref, b1_ref, w2_ref, b2_ref, w3_ref, b3_ref,
                o_ref, *, W):
    """One grid step = one group of NB images laid out as (C, L = NB*H*W)."""
    x = x_ref[0]                                         # (Cin, L) f32
    L = x.shape[-1]

    # --- binary_conv1: folded-BN 1x1 conv + ReLU6 (one matmul) ---
    h1 = jnp.dot(w1_ref[...], x, preferred_element_type=jnp.float32)
    h1 = jnp.clip(h1 + b1_ref[...], 0.0, 6.0)            # (C1p, L)

    # --- binary_conv2: folded-BN 1x1 conv + ReLU6 (one matmul) ---
    h2 = jnp.dot(w2_ref[...], h1, preferred_element_type=jnp.float32)
    h2 = jnp.clip(h2 + b2_ref[...], 0.0, 6.0)            # (C2p, L), pad rows 0

    # --- binary_conv3: 3x3 "same" conv as a 9-tap accumulate. Each tap is a
    #     lane roll of h2, zeroed at the padding border (and across image
    #     boundaries) by a precomputed mask, then one small MXU matmul that
    #     accumulates into `acc` (no 9-piece im2col concat -> low vreg
    #     pressure). ---
    acc = None
    t = 0
    for dy in (-1, 0, 1):
        for dx in (-1, 0, 1):
            s = dy * W + dx                              # flattened-pixel shift
            if s == 0:
                tap = h2
            else:
                shifted = pltpu.roll(h2, (-s) % L, axis=1)
                tap = shifted * m_ref[pl.ds(t, 1), :]    # (C2p, L) * (1, L)
            d = jnp.dot(w3_ref[t], tap, preferred_element_type=jnp.float32)
            acc = d if acc is None else acc + d
            t += 1
    o_ref[0] = acc + b3_ref[...]                         # (COp, L) lane-dense


def _round_up(v, m):
    return -(-v // m) * m


def _default_groups(n):
    """v7x has 2 TensorCores/chip: keep a 2-way parallel grid there; on
    single-core chips (v5e/v6e) run the whole batch in one grid step."""
    try:
        kind = jax.devices()[0].device_kind.lower()
    except Exception:
        kind = ""
    g = 2 if ("v7" in kind or "7x" in kind) else 1
    if n % g != 0:
        g = 1
    return max(1, min(g, n))


def _make_tap_masks(H, W, NB):
    """(9, NB*H*W) float masks: mask[t, p] = 1 iff tap t at pixel p stays
    inside its own image (emulates padding=1 and blocks cross-image lane
    leakage when the batch is folded onto the lane axis)."""
    HW = H * W
    p = np.arange(NB * HW) % HW                          # per-image pixel index
    yy, xx = p // W, p % W
    rows = []
    for dy in (-1, 0, 1):
        for dx in (-1, 0, 1):
            ok = (yy + dy >= 0) & (yy + dy < H) & (xx + dx >= 0) & (xx + dx < W)
            rows.append(ok.astype(np.float32))
    return jnp.asarray(np.stack(rows, axis=0))


def s2p2_forward(feat_nchw, kernel_params, groups=None):
    W1, B1, W2, B2, W3, B3, CO = kernel_params
    N, C, H, Wd = feat_nchw.shape
    HW = H * Wd
    G = _default_groups(N) if groups is None else groups
    NB = N // G
    L = NB * HW
    COp = W3.shape[1]

    # (N,C,H,W) -> (G, C, NB*HW): pixels (and all images of a group) live on
    # the 128-wide lane axis so every matmul and every store is lane-dense.
    x = feat_nchw.astype(jnp.float32).reshape(G, NB, C, HW)
    x = jnp.transpose(x, (0, 2, 1, 3)).reshape(G, C, L)
    masks = _make_tap_masks(H, Wd, NB)                   # (9, L) constant

    def full_spec(shape):
        return pl.BlockSpec(shape, lambda g, _nd=len(shape): (0,) * _nd)

    out = pl.pallas_call(
        functools.partial(s2p2_kernel, W=Wd),
        out_shape=jax.ShapeDtypeStruct((G, COp, L), jnp.float32),
        grid_spec=pltpu.PrefetchScalarGridSpec(
            num_scalar_prefetch=0,
            grid=(G,),
            in_specs=[
                pl.BlockSpec((1, C, L), lambda g: (g, 0, 0)),
                full_spec(masks.shape),
                full_spec(W1.shape), full_spec(B1.shape),
                full_spec(W2.shape), full_spec(B2.shape),
                full_spec(W3.shape), full_spec(B3.shape),
            ],
            out_specs=pl.BlockSpec((1, COp, L), lambda g: (g, 0, 0)),
        ),
        compiler_params=pltpu.CompilerParams(
            dimension_semantics=("parallel",)),
        # NOTE: per-step VMEM here is ~0.3 MiB; only if the per-group image
        # count is scaled way up would vmem_limit_bytes need raising (v7x has
        # half the VMEM of v5e/v6e).
    )(x, masks, W1, B1, W2, B2, W3, B3)

    out = out.reshape(G, COp, NB, H, Wd)
    out = jnp.transpose(out, (0, 2, 1, 3, 4)).reshape(N, COp, H, Wd)
    return out[:, :CO]                                   # NCHW, like PyTorch


def prepare_kernel_operands(params, eps=1e-5):
    """Fold inference-mode BN into the 1x1 conv weights and lay everything out
    for the channels-on-sublanes kernel, padding channel counts to sublane
    multiples of 8 (including the 2 output channels -> 8)."""
    def fold(w, bn):
        s = bn["gamma"] / jnp.sqrt(bn["var"] + eps)
        return w * s[:, None], bn["beta"] - bn["mean"] * s

    w1f, b1f = fold(params["w1"], params["bn1"])          # (c1, c0), (c1,)
    w2f, b2f = fold(params["w2"], params["bn2"])          # (c2, c1), (c2,)
    c1, c0 = w1f.shape
    c2 = w2f.shape[0]
    co, _, kh, kw = params["w3"].shape
    c1p, c2p, cop = _round_up(c1, 8), _round_up(c2, 8), _round_up(co, 8)

    W1 = jnp.zeros((c1p, c0), jnp.float32).at[:c1].set(w1f)
    B1 = jnp.zeros((c1p, 1), jnp.float32).at[:c1, 0].set(b1f)
    W2 = jnp.zeros((c2p, c1p), jnp.float32).at[:c2, :c1].set(w2f)
    B2 = jnp.zeros((c2p, 1), jnp.float32).at[:c2, 0].set(b2f)

    # (co, c2, kh, kw) -> (kh*kw, cop, c2p): one (cop, c2p) matrix per tap,
    # in the kernel's tap order (dy outer, dx inner).
    w3 = jnp.zeros((cop, c2p, kh, kw), jnp.float32).at[:co, :c2].set(
        params["w3"].astype(jnp.float32))
    W3 = jnp.transpose(w3, (2, 3, 0, 1)).reshape(kh * kw, cop, c2p)
    B3 = jnp.zeros((cop, 1), jnp.float32).at[:co, 0].set(params["b3"])
    return W1, B1, W2, B2, W3, B3, co


def make_params(key, feature=64, co=2):
    c0, c1, c2 = feature, feature // 4, feature // 6
    ks = jax.random.split(key, 12)

    def bn(kg, kb, km, kv, c):
        return dict(
            gamma=jax.random.uniform(kg, (c,), jnp.float32, 0.5, 1.5),
            beta=0.1 * jax.random.normal(kb, (c,), jnp.float32),
            mean=0.1 * jax.random.normal(km, (c,), jnp.float32),
            var=jax.random.uniform(kv, (c,), jnp.float32, 0.5, 1.5))

    return dict(
        w1=0.1 * jax.random.normal(ks[0], (c1, c0), jnp.float32),        # (out, in)
        bn1=bn(ks[1], ks[2], ks[3], ks[4], c1),
        w2=0.1 * jax.random.normal(ks[5], (c2, c1), jnp.float32),
        bn2=bn(ks[6], ks[7], ks[8], ks[9], c2),
        w3=0.1 * jax.random.normal(ks[10], (co, c2, 3, 3), jnp.float32),  # (out, in, kh, kw)
        b3=0.1 * jax.random.normal(ks[11], (co,), jnp.float32),
    )


def ref_forward(feat_nchw, params, eps=1e-5):
    """Pure-JAX NCHW reference mirroring the PyTorch module (inference BN)."""
    hi = jax.lax.Precision.HIGHEST

    def conv1x1_bn_relu6(h, w, bn):
        y = jnp.einsum("nchw,oc->nohw", h, w, precision=hi)
        s = bn["gamma"] / jnp.sqrt(bn["var"] + eps)
        b = bn["beta"] - bn["mean"] * s
        return jnp.clip(y * s[None, :, None, None] + b[None, :, None, None],
                        0.0, 6.0)

    x = feat_nchw.astype(jnp.float32)
    h1 = conv1x1_bn_relu6(x, params["w1"], params["bn1"])
    h2 = conv1x1_bn_relu6(h1, params["w2"], params["bn2"])

    N, _, H, W = x.shape
    co = params["w3"].shape[0]
    pad = jnp.pad(h2, ((0, 0), (0, 0), (1, 1), (1, 1)))
    out = jnp.zeros((N, co, H, W), jnp.float32) + params["b3"][None, :, None, None]
    for ky in range(3):
        for kx in range(3):
            out = out + jnp.einsum("nchw,oc->nohw",
                                   pad[:, :, ky:ky + H, kx:kx + W],
                                   params["w3"][:, :, ky, kx], precision=hi)
    return out


if __name__ == "__main__":
    key = jax.random.PRNGKey(0)
    k_feat, k_params = jax.random.split(key)

    N, C, H, W = 2, 64, 16, 16            # PyTorch NCHW input: (2, 64, 16, 16)
    feat = jax.random.normal(k_feat, (N, C, H, W), jnp.float32)
    params = make_params(k_params, feature=C)
    kernel_ops = prepare_kernel_operands(params)

    out = jax.block_until_ready(s2p2_forward(feat, kernel_ops))
    ref = jax.block_until_ready(ref_forward(feat, params))
    np.testing.assert_allclose(np.asarray(out), np.asarray(ref),
                               rtol=1e-4, atol=1e-4)

    print("KERNEL_OK")
</pallas_src>

<mosaic_0001>
module attributes {stable_mosaic.version = 11 : i64} {
  func.func @s2p2_kernel(%arg0: i32, %arg1: memref<1x64x512xf32, #tpu.memory_space<vmem>>, %arg2: memref<9x512xf32, #tpu.memory_space<vmem>>, %arg3: memref<16x64xf32, #tpu.memory_space<vmem>>, %arg4: memref<16x1xf32, #tpu.memory_space<vmem>>, %arg5: memref<16x16xf32, #tpu.memory_space<vmem>>, %arg6: memref<16x1xf32, #tpu.memory_space<vmem>>, %arg7: memref<9x8x16xf32, #tpu.memory_space<vmem>>, %arg8: memref<8x1xf32, #tpu.memory_space<vmem>>, %arg9: memref<1x8x512xf32, #tpu.memory_space<vmem>>) attributes {dimension_semantics = [#tpu.dimension_semantics<parallel>], iteration_bounds = array<i64: 1>, scalar_prefetch = 0 : i64, scratch_operands = 0 : i64, tpu.core_type = #tpu.core_type<tc>, window_params = [{transform_indices = @transform_0, window_bounds = array<i64: 1, 64, 512>}, {pipeline_mode = #tpu.pipeline_mode<synchronous>, transform_indices = @transform_1, window_bounds = array<i64: 9, 512>}, {pipeline_mode = #tpu.pipeline_mode<synchronous>, transform_indices = @transform_2, window_bounds = array<i64: 16, 64>}, {pipeline_mode = #tpu.pipeline_mode<synchronous>, transform_indices = @transform_3, window_bounds = array<i64: 16, 1>}, {pipeline_mode = #tpu.pipeline_mode<synchronous>, transform_indices = @transform_4, window_bounds = array<i64: 16, 16>}, {pipeline_mode = #tpu.pipeline_mode<synchronous>, transform_indices = @transform_5, window_bounds = array<i64: 16, 1>}, {pipeline_mode = #tpu.pipeline_mode<synchronous>, transform_indices = @transform_6, window_bounds = array<i64: 9, 8, 16>}, {pipeline_mode = #tpu.pipeline_mode<synchronous>, transform_indices = @transform_7, window_bounds = array<i64: 8, 1>}, {transform_indices = @transform_8, window_bounds = array<i64: 1, 8, 512>}]} {
    %c0 = arith.constant 0 : index
    %c0_0 = arith.constant 0 : index
    %c0_1 = arith.constant 0 : index
    %0 = vector.load %arg1[%c0, %c0_0, %c0_1] : memref<1x64x512xf32, #tpu.memory_space<vmem>>, vector<1x64x512xf32>
    %1 = vector.shape_cast %0 : vector<1x64x512xf32> to vector<64x512xf32>
    %c0_2 = arith.constant 0 : index
    %c0_3 = arith.constant 0 : index
    %2 = vector.load %arg3[%c0_2, %c0_3] : memref<16x64xf32, #tpu.memory_space<vmem>>, vector<16x64xf32>
    %cst = arith.constant dense<0.000000e+00> : vector<16x512xf32>
    %3 = tpu.matmul %2, %1, %cst {dimension_numbers = #tpu.dot_dimension_numbers<[1], [0], [0], [1], [0, 0, 1, 1], [], []>} : vector<16x64xf32>, vector<64x512xf32>, vector<16x512xf32> -> vector<16x512xf32>
    %c0_4 = arith.constant 0 : index
    %c0_5 = arith.constant 0 : index
    %4 = vector.load %arg4[%c0_4, %c0_5] : memref<16x1xf32, #tpu.memory_space<vmem>>, vector<16x1xf32>
    %5 = vector.broadcast %4 : vector<16x1xf32> to vector<16x512xf32>
    %6 = arith.addf %3, %5 : vector<16x512xf32>
    %cst_6 = arith.constant 0.000000e+00 : f32
    %cst_7 = arith.constant 6.000000e+00 : f32
    %7 = vector.broadcast %cst_6 : f32 to vector<16x512xf32>
    %8 = arith.maximumf %7, %6 : vector<16x512xf32>
    %9 = vector.broadcast %cst_7 : f32 to vector<16x512xf32>
    %10 = arith.minimumf %9, %8 : vector<16x512xf32>
    %c0_8 = arith.constant 0 : index
    %c0_9 = arith.constant 0 : index
    %11 = vector.load %arg5[%c0_8, %c0_9] : memref<16x16xf32, #tpu.memory_space<vmem>>, vector<16x16xf32>
    %cst_10 = arith.constant dense<0.000000e+00> : vector<16x512xf32>
    %12 = tpu.matmul %11, %10, %cst_10 {dimension_numbers = #tpu.dot_dimension_numbers<[1], [0], [0], [1], [0, 0, 1, 1], [], []>} : vector<16x16xf32>, vector<16x512xf32>, vector<16x512xf32> -> vector<16x512xf32>
    %c0_11 = arith.constant 0 : index
    %c0_12 = arith.constant 0 : index
    %13 = vector.load %arg6[%c0_11, %c0_12] : memref<16x1xf32, #tpu.memory_space<vmem>>, vector<16x1xf32>
    %14 = vector.broadcast %13 : vector<16x1xf32> to vector<16x512xf32>
    %15 = arith.addf %12, %14 : vector<16x512xf32>
    %cst_13 = arith.constant 0.000000e+00 : f32
    %cst_14 = arith.constant 6.000000e+00 : f32
    %16 = vector.broadcast %cst_13 : f32 to vector<16x512xf32>
    %17 = arith.maximumf %16, %15 : vector<16x512xf32>
    %18 = vector.broadcast %cst_14 : f32 to vector<16x512xf32>
    %19 = arith.minimumf %18, %17 : vector<16x512xf32>
    %c17_i32 = arith.constant 17 : i32
    %20 = tpu.dynamic_rotate %19 by %c17_i32 dim 1 : vector<16x512xf32>, i32 -> vector<16x512xf32>
    %c0_15 = arith.constant 0 : index
    %c0_16 = arith.constant 0 : index
    %21 = vector.load %arg2[%c0_15, %c0_16] : memref<9x512xf32, #tpu.memory_space<vmem>>, vector<1x512xf32>
    %22 = vector.broadcast %21 : vector<1x512xf32> to vector<16x512xf32>
    %23 = arith.mulf %20, %22 : vector<16x512xf32>
    %c0_17 = arith.constant 0 : index
    %c0_18 = arith.constant 0 : index
    %c0_19 = arith.constant 0 : index
    %24 = vector.load %arg7[%c0_17, %c0_18, %c0_19] : memref<9x8x16xf32, #tpu.memory_space<vmem>>, vector<1x8x16xf32>
    %25 = vector.shape_cast %24 : vector<1x8x16xf32> to vector<8x16xf32>
    %cst_20 = arith.constant dense<0.000000e+00> : vector<8x512xf32>
    %26 = tpu.matmul %25, %23, %cst_20 {dimension_numbers = #tpu.dot_dimension_numbers<[1], [0], [0], [1], [0, 0, 1, 1], [], []>} : vector<8x16xf32>, vector<16x512xf32>, vector<8x512xf32> -> vector<8x512xf32>
    %c16_i32 = arith.constant 16 : i32
    %27 = tpu.dynamic_rotate %19 by %c16_i32 dim 1 : vector<16x512xf32>, i32 -> vector<16x512xf32>
    %c1 = arith.constant 1 : index
    %c0_21 = arith.constant 0 : index
    %28 = vector.load %arg2[%c1, %c0_21] : memref<9x512xf32, #tpu.memory_space<vmem>>, vector<1x512xf32>
    %29 = vector.broadcast %28 : vector<1x512xf32> to vector<16x512xf32>
    %30 = arith.mulf %27, %29 : vector<16x512xf32>
    %c1_22 = arith.constant 1 : index
    %c0_23 = arith.constant 0 : index
    %c0_24 = arith.constant 0 : index
    %31 = vector.load %arg7[%c1_22, %c0_23, %c0_24] : memref<9x8x16xf32, #tpu.memory_space<vmem>>, vector<1x8x16xf32>
    %32 = vector.shape_cast %31 : vector<1x8x16xf32> to vector<8x16xf32>
    %cst_25 = arith.constant dense<0.000000e+00> : vector<8x512xf32>
    %33 = tpu.matmul %32, %30, %cst_25 {dimension_numbers = #tpu.dot_dimension_numbers<[1], [0], [0], [1], [0, 0, 1, 1], [], []>} : vector<8x16xf32>, vector<16x512xf32>, vector<8x512xf32> -> vector<8x512xf32>
    %34 = arith.addf %26, %33 : vector<8x512xf32>
    %c15_i32 = arith.constant 15 : i32
    %35 = tpu.dynamic_rotate %19 by %c15_i32 dim 1 : vector<16x512xf32>, i32 -> vector<16x512xf32>
    %c2 = arith.constant 2 : index
    %c0_26 = arith.constant 0 : index
    %36 = vector.load %arg2[%c2, %c0_26] : memref<9x512xf32, #tpu.memory_space<vmem>>, vector<1x512xf32>
    %37 = vector.broadcast %36 : vector<1x512xf32> to vector<16x512xf32>
    %38 = arith.mulf %35, %37 : vector<16x512xf32>
    %c2_27 = arith.constant 2 : index
    %c0_28 = arith.constant 0 : index
    %c0_29 = arith.constant 0 : index
    %39 = vector.load %arg7[%c2_27, %c0_28, %c0_29] : memref<9x8x16xf32, #tpu.memory_space<vmem>>, vector<1x8x16xf32>
    %40 = vector.shape_cast %39 : vector<1x8x16xf32> to vector<8x16xf32>
    %cst_30 = arith.constant dense<0.000000e+00> : vector<8x512xf32>
    %41 = tpu.matmul %40, %38, %cst_30 {dimension_numbers = #tpu.dot_dimension_numbers<[1], [0], [0], [1], [0, 0, 1, 1], [], []>} : vector<8x16xf32>, vector<16x512xf32>, vector<8x512xf32> -> vector<8x512xf32>
    %42 = arith.addf %34, %41 : vector<8x512xf32>
    %c1_i32 = arith.constant 1 : i32
    %43 = tpu.dynamic_rotate %19 by %c1_i32 dim 1 : vector<16x512xf32>, i32 -> vector<16x512xf32>
    %c3 = arith.constant 3 : index
    %c0_31 = arith.constant 0 : index
    %44 = vector.load %arg2[%c3, %c0_31] : memref<9x512xf32, #tpu.memory_space<vmem>>, vector<1x512xf32>
    %45 = vector.broadcast %44 : vector<1x512xf32> to vector<16x512xf32>
    %46 = arith.mulf %43, %45 : vector<16x512xf32>
    %c3_32 = arith.constant 3 : index
    %c0_33 = arith.constant 0 : index
    %c0_34 = arith.constant 0 : index
    %47 = vector.load %arg7[%c3_32, %c0_33, %c0_34] : memref<9x8x16xf32, #tpu.memory_space<vmem>>, vector<1x8x16xf32>
    %48 = vector.shape_cast %47 : vector<1x8x16xf32> to vector<8x16xf32>
    %cst_35 = arith.constant dense<0.000000e+00> : vector<8x512xf32>
    %49 = tpu.matmul %48, %46, %cst_35 {dimension_numbers = #tpu.dot_dimension_numbers<[1], [0], [0], [1], [0, 0, 1, 1], [], []>} : vector<8x16xf32>, vector<16x512xf32>, vector<8x512xf32> -> vector<8x512xf32>
    %50 = arith.addf %42, %49 : vector<8x512xf32>
    %c4 = arith.constant 4 : index
    %c0_36 = arith.constant 0 : index
    %c0_37 = arith.constant 0 : index
    %51 = vector.load %arg7[%c4, %c0_36, %c0_37] : memref<9x8x16xf32, #tpu.memory_space<vmem>>, vector<1x8x16xf32>
    %52 = vector.shape_cast %51 : vector<1x8x16xf32> to vector<8x16xf32>
    %cst_38 = arith.constant dense<0.000000e+00> : vector<8x512xf32>
    %53 = tpu.matmul %52, %19, %cst_38 {dimension_numbers = #tpu.dot_dimension_numbers<[1], [0], [0], [1], [0, 0, 1, 1], [], []>} : vector<8x16xf32>, vector<16x512xf32>, vector<8x512xf32> -> vector<8x512xf32>
    %54 = arith.addf %50, %53 : vector<8x512xf32>
    %c511_i32 = arith.constant 511 : i32
    %55 = tpu.dynamic_rotate %19 by %c511_i32 dim 1 : vector<16x512xf32>, i32 -> vector<16x512xf32>
    %c5 = arith.constant 5 : index
    %c0_39 = arith.constant 0 : index
    %56 = vector.load %arg2[%c5, %c0_39] : memref<9x512xf32, #tpu.memory_space<vmem>>, vector<1x512xf32>
    %57 = vector.broadcast %56 : vector<1x512xf32> to vector<16x512xf32>
    %58 = arith.mulf %55, %57 : vector<16x512xf32>
    %c5_40 = arith.constant 5 : index
    %c0_41 = arith.constant 0 : index
    %c0_42 = arith.constant 0 : index
    %59 = vector.load %arg7[%c5_40, %c0_41, %c0_42] : memref<9x8x16xf32, #tpu.memory_space<vmem>>, vector<1x8x16xf32>
    %60 = vector.shape_cast %59 : vector<1x8x16xf32> to vector<8x16xf32>
    %cst_43 = arith.constant dense<0.000000e+00> : vector<8x512xf32>
    %61 = tpu.matmul %60, %58, %cst_43 {dimension_numbers = #tpu.dot_dimension_numbers<[1], [0], [0], [1], [0, 0, 1, 1], [], []>} : vector<8x16xf32>, vector<16x512xf32>, vector<8x512xf32> -> vector<8x512xf32>
    %62 = arith.addf %54, %61 : vector<8x512xf32>
    %c497_i32 = arith.constant 497 : i32
    %63 = tpu.dynamic_rotate %19 by %c497_i32 dim 1 : vector<16x512xf32>, i32 -> vector<16x512xf32>
    %c6 = arith.constant 6 : index
    %c0_44 = arith.constant 0 : index
    %64 = vector.load %arg2[%c6, %c0_44] : memref<9x512xf32, #tpu.memory_space<vmem>>, vector<1x512xf32>
    %65 = vector.broadcast %64 : vector<1x512xf32> to vector<16x512xf32>
    %66 = arith.mulf %63, %65 : vector<16x512xf32>
    %c6_45 = arith.constant 6 : index
    %c0_46 = arith.constant 0 : index
    %c0_47 = arith.constant 0 : index
    %67 = vector.load %arg7[%c6_45, %c0_46, %c0_47] : memref<9x8x16xf32, #tpu.memory_space<vmem>>, vector<1x8x16xf32>
    %68 = vector.shape_cast %67 : vector<1x8x16xf32> to vector<8x16xf32>
    %cst_48 = arith.constant dense<0.000000e+00> : vector<8x512xf32>
    %69 = tpu.matmul %68, %66, %cst_48 {dimension_numbers = #tpu.dot_dimension_numbers<[1], [0], [0], [1], [0, 0, 1, 1], [], []>} : vector<8x16xf32>, vector<16x512xf32>, vector<8x512xf32> -> vector<8x512xf32>
    %70 = arith.addf %62, %69 : vector<8x512xf32>
    %c496_i32 = arith.constant 496 : i32
    %71 = tpu.dynamic_rotate %19 by %c496_i32 dim 1 : vector<16x512xf32>, i32 -> vector<16x512xf32>
    %c7 = arith.constant 7 : index
    %c0_49 = arith.constant 0 : index
    %72 = vector.load %arg2[%c7, %c0_49] : memref<9x512xf32, #tpu.memory_space<vmem>>, vector<1x512xf32>
    %73 = vector.broadcast %72 : vector<1x512xf32> to vector<16x512xf32>
    %74 = arith.mulf %71, %73 : vector<16x512xf32>
    %c7_50 = arith.constant 7 : index
    %c0_51 = arith.constant 0 : index
    %c0_52 = arith.constant 0 : index
    %75 = vector.load %arg7[%c7_50, %c0_51, %c0_52] : memref<9x8x16xf32, #tpu.memory_space<vmem>>, vector<1x8x16xf32>
    %76 = vector.shape_cast %75 : vector<1x8x16xf32> to vector<8x16xf32>
    %cst_53 = arith.constant dense<0.000000e+00> : vector<8x512xf32>
    %77 = tpu.matmul %76, %74, %cst_53 {dimension_numbers = #tpu.dot_dimension_numbers<[1], [0], [0], [1], [0, 0, 1, 1], [], []>} : vector<8x16xf32>, vector<16x512xf32>, vector<8x512xf32> -> vector<8x512xf32>
    %78 = arith.addf %70, %77 : vector<8x512xf32>
    %c495_i32 = arith.constant 495 : i32
    %79 = tpu.dynamic_rotate %19 by %c495_i32 dim 1 : vector<16x512xf32>, i32 -> vector<16x512xf32>
    %c8 = arith.constant 8 : index
    %c0_54 = arith.constant 0 : index
    %80 = vector.load %arg2[%c8, %c0_54] : memref<9x512xf32, #tpu.memory_space<vmem>>, vector<1x512xf32>
    %81 = vector.broadcast %80 : vector<1x512xf32> to vector<16x512xf32>
    %82 = arith.mulf %79, %81 : vector<16x512xf32>
    %c8_55 = arith.constant 8 : index
    %c0_56 = arith.constant 0 : index
    %c0_57 = arith.constant 0 : index
    %83 = vector.load %arg7[%c8_55, %c0_56, %c0_57] : memref<9x8x16xf32, #tpu.memory_space<vmem>>, vector<1x8x16xf32>
    %84 = vector.shape_cast %83 : vector<1x8x16xf32> to vector<8x16xf32>
    %cst_58 = arith.constant dense<0.000000e+00> : vector<8x512xf32>
    %85 = tpu.matmul %84, %82, %cst_58 {dimension_numbers = #tpu.dot_dimension_numbers<[1], [0], [0], [1], [0, 0, 1, 1], [], []>} : vector<8x16xf32>, vector<16x512xf32>, vector<8x512xf32> -> vector<8x512xf32>
    %86 = arith.addf %78, %85 : vector<8x512xf32>
    %c0_59 = arith.constant 0 : index
    %c0_60 = arith.constant 0 : index
    %87 = vector.load %arg8[%c0_59, %c0_60] : memref<8x1xf32, #tpu.memory_space<vmem>>, vector<8x1xf32>
    %88 = vector.broadcast %87 : vector<8x1xf32> to vector<8x512xf32>
    %89 = arith.addf %86, %88 : vector<8x512xf32>
    %c0_61 = arith.constant 0 : index
    %c0_62 = arith.constant 0 : index
    %c0_63 = arith.constant 0 : index
    %90 = vector.load %arg9[%c0_61, %c0_62, %c0_63] : memref<1x8x512xf32, #tpu.memory_space<vmem>>, vector<1x8x512xf32>
    %91 = vector.shape_cast %90 : vector<1x8x512xf32> to vector<8x512xf32>
    %92 = vector.shape_cast %89 : vector<8x512xf32> to vector<1x8x512xf32>
    tpu.vector_store %arg9[%c0_61, %c0_62, %c0_63], %92 {strides = array<i32>} : memref<1x8x512xf32, #tpu.memory_space<vmem>>, vector<1x8x512xf32>,
    return
  }
  func.func @transform_0(%arg0: i32) -> (i32, i32, i32) {
    %c0_i32 = arith.constant 0 : i32
    %c0_i32_0 = arith.constant 0 : i32
    %c0_i32_1 = arith.constant 0 : i32
    return %arg0, %c0_i32, %c0_i32_0 : i32, i32, i32
  }
  func.func @transform_1(%arg0: i32) -> (i32, i32) {
    %c0_i32 = arith.constant 0 : i32
    %c0_i32_0 = arith.constant 0 : i32
    %c0_i32_1 = arith.constant 0 : i32
    return %c0_i32, %c0_i32_0 : i32, i32
  }
  func.func @transform_2(%arg0: i32) -> (i32, i32) {
    %c0_i32 = arith.constant 0 : i32
    %c0_i32_0 = arith.constant 0 : i32
    %c0_i32_1 = arith.constant 0 : i32
    return %c0_i32, %c0_i32_0 : i32, i32
  }
  func.func @transform_3(%arg0: i32) -> (i32, i32) {
    %c0_i32 = arith.constant 0 : i32
    %c0_i32_0 = arith.constant 0 : i32
    %c0_i32_1 = arith.constant 0 : i32
    return %c0_i32, %c0_i32_0 : i32, i32
  }
  func.func @transform_4(%arg0: i32) -> (i32, i32) {
    %c0_i32 = arith.constant 0 : i32
    %c0_i32_0 = arith.constant 0 : i32
    %c0_i32_1 = arith.constant 0 : i32
    return %c0_i32, %c0_i32_0 : i32, i32
  }
  func.func @transform_5(%arg0: i32) -> (i32, i32) {
    %c0_i32 = arith.constant 0 : i32
    %c0_i32_0 = arith.constant 0 : i32
    %c0_i32_1 = arith.constant 0 : i32
    return %c0_i32, %c0_i32_0 : i32, i32
  }
  func.func @transform_6(%arg0: i32) -> (i32, i32, i32) {
    %c0_i32 = arith.constant 0 : i32
    %c0_i32_0 = arith.constant 0 : i32
    %c0_i32_1 = arith.constant 0 : i32
    %c0_i32_2 = arith.constant 0 : i32
    return %c0_i32, %c0_i32_0, %c0_i32_1 : i32, i32, i32
  }
  func.func @transform_7(%arg0: i32) -> (i32, i32) {
    %c0_i32 = arith.constant 0 : i32
    %c0_i32_0 = arith.constant 0 : i32
    %c0_i32_1 = arith.constant 0 : i32
    return %c0_i32, %c0_i32_0 : i32, i32
  }
  func.func @transform_8(%arg0: i32) -> (i32, i32, i32) {
    %c0_i32 = arith.constant 0 : i32
    %c0_i32_0 = arith.constant 0 : i32
    %c0_i32_1 = arith.constant 0 : i32
    return %arg0, %c0_i32, %c0_i32_0 : i32, i32, i32
  }
}

</mosaic_0001>

<llo_original>
// kernel: tpu_custom_call.1
$region0: #{tpu_custom_call.1}
  #allocation0 [shape = 'u32[]', space=smem, size = 0x4, offset = 0x4, fixed_abs, tag = 'smem constant byte address 0x4 - core index']
  #allocation1 [shape = 'u32[144,128]{1,0:T(1,128)}', space=vmem, size = 0x12000, scoped, tag = 'internal scratch']
  %s0 = inlined_call_operand.hbm [shape: f32[1,64,512], index: 0, kind: input, shape index: {}]
  %s1 = inlined_call_operand.hbm [shape: f32[9,512], index: 1, kind: input, shape index: {}]
  %s2 = inlined_call_operand.vmem [shape: f32[16,64], index: 2, kind: input, shape index: {}]
  %s3 = inlined_call_operand.vmem [shape: f32[16,1], index: 3, kind: input, shape index: {}]
  %s4 = inlined_call_operand.vmem [shape: f32[16,16], index: 4, kind: input, shape index: {}]
  %s5 = inlined_call_operand.vmem [shape: f32[16,1], index: 5, kind: input, shape index: {}]
  %s6 = inlined_call_operand.hbm [shape: f32[9,8,16], index: 6, kind: input, shape index: {}]
  %s7 = inlined_call_operand.vmem [shape: f32[8,1], index: 7, kind: input, shape index: {}]
  %s8 = inlined_call_operand.hbm [shape: f32[1,8,512], index: 8, kind: output, shape index: {}]
  %s9 = sld [smem:[#allocation0]]
  $region54: #{tpu_custom_call.1} parent=0
    _
  %s11 = ssub.s32 1, %s9
  %s12 = scalar_select 0, %s11, %s9
  $region1: #{tpu_custom_call.1} parent=0
    #allocation2 [shape = 'u8[131072]{0}', space=vmem, size = 0x20000, scoped, tag = 'input window, operand 0, single buffered']
    #allocation3 [shape = 's32[1]{0}', space=sflag, size = 0x4, scoped, tag = 'scoped memory for tpu_custom_call.1']
    #allocation4 [shape = 's32[1]{0}', space=sflag, size = 0x4, scoped, tag = 'scoped memory for tpu_custom_call.1']
    #allocation5 [shape = 'u8[32768]{0}', space=vmem, size = 0x8000, scoped, tag = 'input window, operand 1, single buffered']
    #allocation6 [shape = 's32[1]{0}', space=sflag, size = 0x4, scoped, tag = 'scoped memory for tpu_custom_call.1']
    #allocation7 [shape = 'u8[36864]{0}', space=vmem, size = 0x9000, scoped, tag = 'input window, operand 6, single buffered']
    #allocation8 [shape = 'u8[16384]{0}', space=vmem, size = 0x4000, scoped, tag = 'output window, operand 0, single buffered']
    %13 = vsyncpa [#allocation3], 0
    %14 = vsyncpa [#allocation6], 0
    %15 = vsyncpa [#allocation4], 0
    // Predicated region
    $region2: #{tpu_custom_call.1} parent=1 // pred_check
      _
    $region3: #{tpu_custom_call.1} parent=1 // pred_check_branch
      %17 = sbr.rel (0) target = $region5
    $region4: #{tpu_custom_call.1} parent=1 // pred_region
      %s19 = ssub.s32 4096, 4096
      %20 = vsyncadd [#allocation3], %s19
      %s21 = sshll.u32 [#allocation2], 4
      %s22 = int_to_ptr.vmem [resolvable:$true] %s21
      %27 = dma.hbm_to_vmem [thread:$0]  %s0, 4096, %s22, [#allocation3], 512, 512, 32
    $region5: #{tpu_custom_call.1} parent=1 // pred_fallthru
      _
    // Predicated region
    $region6: #{tpu_custom_call.1} parent=1 // pred_check
      _
    $region7: #{tpu_custom_call.1} parent=1 // pred_check_branch
      %29 = sbr.rel (0) target = $region9
    $region8: #{tpu_custom_call.1} parent=1 // pred_region
      %s31 = ssub.s32 1024, 1024
      %32 = vsyncadd [#allocation6], %s31
      %s33 = sshll.u32 [#allocation5], 4
      %s34 = int_to_ptr.vmem [resolvable:$true] %s33
      %39 = dma.hbm_to_vmem [thread:$0]  %s1, 1024, %s34, [#allocation6], 512, 512, 32
    $region9: #{tpu_custom_call.1} parent=1 // pred_fallthru
      _
    // Predicated region
    $region10: #{tpu_custom_call.1} parent=1 // pred_check
      _
    $region11: #{tpu_custom_call.1} parent=1 // pred_check_branch
      %41 = sbr.rel (0) target = $region13
    $region12: #{tpu_custom_call.1} parent=1 // pred_region
      _
    $region13: #{tpu_custom_call.1} parent=1 // pred_fallthru
      _
    // Predicated region
    $region14: #{tpu_custom_call.1} parent=1 // pred_check
      _
    $region15: #{tpu_custom_call.1} parent=1 // pred_check_branch
      %43 = sbr.rel (0) target = $region17
    $region16: #{tpu_custom_call.1} parent=1 // pred_region
      _
    $region17: #{tpu_custom_call.1} parent=1 // pred_fallthru
      _
    // Predicated region
    $region18: #{tpu_custom_call.1} parent=1 // pred_check
      _
    $region19: #{tpu_custom_call.1} parent=1 // pred_check_branch
      %45 = sbr.rel (0) target = $region21
    $region20: #{tpu_custom_call.1} parent=1 // pred_region
      _
    $region21: #{tpu_custom_call.1} parent=1 // pred_fallthru
      _
    // Predicated region
    $region22: #{tpu_custom_call.1} parent=1 // pred_check
      _
    $region23: #{tpu_custom_call.1} parent=1 // pred_check_branch
      %47 = sbr.rel (0) target = $region25
    $region24: #{tpu_custom_call.1} parent=1 // pred_region
      _
    $region25: #{tpu_custom_call.1} parent=1 // pred_fallthru
      _
    // Predicated region
    $region26: #{tpu_custom_call.1} parent=1 // pred_check
      _
    $region27: #{tpu_custom_call.1} parent=1 // pred_check_branch
      %49 = sbr.rel (0) target = $region29
    $region28: #{tpu_custom_call.1} parent=1 // pred_region
      %s51 = ssub.s32 1152, 1152
      %52 = vsyncadd [#allocation6], %s51
      %s53 = sshll.u32 [#allocation7], 4
      %s54 = int_to_ptr.vmem [resolvable:$true] %s53
      %59 = dma.hbm_to_vmem [thread:$0]  %s6, 1152, %s54, [#allocation6], 128, 128, 8
    $region29: #{tpu_custom_call.1} parent=1 // pred_fallthru
      _
    // Predicated region
    $region30: #{tpu_custom_call.1} parent=1 // pred_check
      _
    $region31: #{tpu_custom_call.1} parent=1 // pred_check_branch
      %61 = sbr.rel (0) target = $region33
    $region32: #{tpu_custom_call.1} parent=1 // pred_region
      _
    $region33: #{tpu_custom_call.1} parent=1 // pred_fallthru
      _
    // Predicated region
    $region34: #{tpu_custom_call.1} parent=1 // pred_check
      _
    $region35: #{tpu_custom_call.1} parent=1 // pred_check_branch
      %63 = sbr.rel (0) target = $region37
    $region36: #{tpu_custom_call.1} parent=1 // pred_region
      %64 = dma.done [#allocation3], 4096
    $region37: #{tpu_custom_call.1} parent=1 // pred_fallthru
      _
    // Predicated region
    $region38: #{tpu_custom_call.1} parent=1 // pred_check
      _
    $region39: #{tpu_custom_call.1} parent=1 // pred_check_branch
      %66 = sbr.rel (0) target = $region41
    $region40: #{tpu_custom_call.1} parent=1 // pred_region
      %67 = dma.done [#allocation6], 1024
    $region41: #{tpu_custom_call.1} parent=1 // pred_fallthru
      _
    // Predicated region
    $region42: #{tpu_custom_call.1} parent=1 // pred_check
      _
    $region43: #{tpu_custom_call.1} parent=1 // pred_check_branch
      %69 = sbr.rel (0) target = $region45
    $region44: #{tpu_custom_call.1} parent=1 // pred_region
      %70 = dma.done [#allocation6], 1152
    $region45: #{tpu_custom_call.1} parent=1 // pred_fallthru
      _
    %v71 = vld [vmem:[#allocation2] sm:$0xff]
    %v72 = vld [vmem:[#allocation2 + $0x8] sm:$0xff]
    %v73 = vld [vmem:[#allocation2 + $0x10] sm:$0xff]
    %v74 = vld [vmem:[#allocation2 + $0x18] sm:$0xff]
    %v75 = vld [vmem:[#allocation2 + $0x20] sm:$0xff]
    %v76 = vld [vmem:[#allocation2 + $0x28] sm:$0xff]
    %v77 = vld [vmem:[#allocation2 + $0x30] sm:$0xff]
    %v78 = vld [vmem:[#allocation2 + $0x38] sm:$0xff]
    %v79 = vld [vmem:[#allocation2 + $0x40] sm:$0xff]
    %v80 = vld [vmem:[#allocation2 + $0x48] sm:$0xff]
    %v81 = vld [vmem:[#allocation2 + $0x50] sm:$0xff]
    %v82 = vld [vmem:[#allocation2 + $0x58] sm:$0xff]
    %v83 = vld [vmem:[#allocation2 + $0x60] sm:$0xff]
    %v84 = vld [vmem:[#allocation2 + $0x68] sm:$0xff]
    %v85 = vld [vmem:[#allocation2 + $0x70] sm:$0xff]
    %v86 = vld [vmem:[#allocation2 + $0x78] sm:$0xff]
    %v87 = vld [vmem:[#allocation2 + $0x80] sm:$0xff]
    %v88 = vld [vmem:[#allocation2 + $0x88] sm:$0xff]
    %v89 = vld [vmem:[#allocation2 + $0x90] sm:$0xff]
    %v90 = vld [vmem:[#allocation2 + $0x98] sm:$0xff]
    %v91 = vld [vmem:[#allocation2 + $0xa0] sm:$0xff]
    %v92 = vld [vmem:[#allocation2 + $0xa8] sm:$0xff]
    %v93 = vld [vmem:[#allocation2 + $0xb0] sm:$0xff]
    %v94 = vld [vmem:[#allocation2 + $0xb8] sm:$0xff]
    %v95 = vld [vmem:[#allocation2 + $0xc0] sm:$0xff]
    %v96 = vld [vmem:[#allocation2 + $0xc8] sm:$0xff]
    %v97 = vld [vmem:[#allocation2 + $0xd0] sm:$0xff]
    %v98 = vld [vmem:[#allocation2 + $0xd8] sm:$0xff]
    %v99 = vld [vmem:[#allocation2 + $0xe0] sm:$0xff]
    %v100 = vld [vmem:[#allocation2 + $0xe8] sm:$0xff]
    %v101 = vld [vmem:[#allocation2 + $0xf0] sm:$0xff]
    %v102 = vld [vmem:[#allocation2 + $0xf8] sm:$0xff]
    %v103 = vld [vmem:[%s2] sm:$0xff]
    %v104 = vld [vmem:[%s2 + $0x8] sm:$0xff]
    %v105 = vld [vmem:[%s3] sm:$0xff]
    %v106 = vld [vmem:[%s3 + $0x8] sm:$0xff]
    %108 = vset.pattern.permute.xlu0 0
    %109 = vperm.xlu0 %108, %v105
    %v110 = vpop.permute.xlu0 %109
    %113 = vset.pattern.permute.xlu0 0
    %114 = vperm.xlu0 %113, %v106
    %v115 = vpop.permute.xlu0 %114
    %vm117 = vcmask 523264
    %v119 = vsel %vm117, %v103, 0
    %v122 = vsel %vm117, %v104, 0
    %124 = vmatprep.subr.mxu0 0.0
    %125 = vmatpush1.msra.mxu0 0.0
    %126 = vmatprep.subr.mxu0 0.0
    %127 = vmatpush1.msra.mxu0 0.0
    %128 = vmatprep.subr.mxu0 0.0
    %129 = vmatpush1.msra.mxu0 0.0
    %130 = vmatprep.subr.mxu0 0.0
    %131 = vmatpush1.msra.mxu0 0.0
    %132 = vmatprep.subr.mxu0 0.0
    %133 = vmatpush1.msra.mxu0 0.0
    %134 = vmatprep.subr.mxu0 0.0
    %135 = vmatpush1.msra.mxu0 0.0
    %136 = vmatprep.subr.mxu0 0.0
    %137 = vmatpush1.msra.mxu0 0.0
    %138 = vmatprep.subr.mxu0 0.0
    %139 = vmatpush1.msra.mxu0 0.0
    %140 = vmatprep.subr.mxu0 %v100
    %141 = vmatpush1.msra.mxu0 %v99
    %142 = vmatprep.subr.mxu0 %v96
    %143 = vmatpush1.msra.mxu0 %v95
    %144 = vmatprep.subr.mxu0 %v92
    %145 = vmatpush1.msra.mxu0 %v91
    %146 = vmatprep.subr.mxu0 %v88
    %147 = vmatpush1.msra.mxu0 %v87
    %148 = vmatprep.subr.mxu0 %v84
    %149 = vmatpush1.msra.mxu0 %v83
    %150 = vmatprep.subr.mxu0 %v80
    %151 = vmatpush1.msra.mxu0 %v79
    %152 = vmatprep.subr.mxu0 %v76
    %153 = vmatpush1.msra.mxu0 %v75
    %154 = vmatprep.subr.mxu0 %v72
    %155 = vmatpush1.msra.mxu0 %v71
    %156 = vmatprep.subr.mxu0 0.0
    %157 = vmatpush2.msra.mxu0 0.0
    %158 = vmatprep.subr.mxu0 0.0
    %159 = vmatpush2.msra.mxu0 0.0
    %160 = vmatprep.subr.mxu0 0.0
    %161 = vmatpush2.msra.mxu0 0.0
    %162 = vmatprep.subr.mxu0 0.0
    %163 = vmatpush2.msra.mxu0 0.0
    %164 = vmatprep.subr.mxu0 0.0
    %165 = vmatpush2.msra.mxu0 0.0
    %166 = vmatprep.subr.mxu0 0.0
    %167 = vmatpush2.msra.mxu0 0.0
    %168 = vmatprep.subr.mxu0 0.0
    %169 = vmatpush2.msra.mxu0 0.0
    %170 = vmatprep.subr.mxu0 0.0
    %171 = vmatpush2.msra.mxu0 0.0
    %172 = vmatprep.subr.mxu0 0.0
    %173 = vmatpush2.msra.mxu0 0.0
    %174 = vmatprep.subr.mxu0 0.0
    %175 = vmatpush2.msra.mxu0 0.0
    %176 = vmatprep.subr.mxu0 0.0
    %177 = vmatpush2.msra.mxu0 0.0
    %178 = vmatprep.subr.mxu0 0.0
    %179 = vmatpush2.msra.mxu0 0.0
    %180 = vmatprep.subr.mxu0 0.0
    %181 = vmatpush2.msra.mxu0 0.0
    %182 = vmatprep.subr.mxu0 0.0
    %183 = vmatpush2.msra.mxu0 0.0
    %184 = vmatprep.subr.mxu0 0.0
    %185 = vmatpush2.msra.mxu0 0.0
    %186 = vmatprep.subr.mxu0 0.0
    %187 = vmatpush2.msra.mxu0 0.0
    %188 = vmatprep.mubr.f32.mxu0 0.0
    %189 = vmatmul.mubr.f32.gmra.mxu0 %v119
    %v190 = vpop.f32.mrf.mxu0
    %v191 = vadd.f32 %v110, %v190
    %v192 = vpop.f32.mrf.mxu0
    %v193 = vadd.f32 %v110, %v192
    %194 = vmatprep.mubr.f32.mxu0 0.0
    %195 = vmatmul.mubr.f32.gmra.mxu0 %v122
    %v196 = vpop.f32.mrf.mxu0
    %v197 = vadd.f32 %v115, %v196
    %v198 = vpop.f32.mrf.mxu0
    %v199 = vadd.f32 %v115, %v198
    %200 = vdwg.mxu0
    %201 = vmatprep.subr.mxu0 0.0
    %202 = vmatpush1.msra.mxu0 0.0
    %203 = vmatprep.subr.mxu0 0.0
    %204 = vmatpush1.msra.mxu0 0.0
    %205 = vmatprep.subr.mxu0 0.0
    %206 = vmatpush1.msra.mxu0 0.0
    %207 = vmatprep.subr.mxu0 0.0
    %208 = vmatpush1.msra.mxu0 0.0
    %209 = vmatprep.subr.mxu0 0.0
    %210 = vmatpush1.msra.mxu0 0.0
    %211 = vmatprep.subr.mxu0 0.0
    %212 = vmatpush1.msra.mxu0 0.0
    %213 = vmatprep.subr.mxu0 0.0
    %214 = vmatpush1.msra.mxu0 0.0
    %215 = vmatprep.subr.mxu0 0.0
    %216 = vmatpush1.msra.mxu0 0.0
    %217 = vmatprep.subr.mxu0 %v102
    %218 = vmatpush1.msra.mxu0 %v101
    %219 = vmatprep.subr.mxu0 %v98
    %220 = vmatpush1.msra.mxu0 %v97
    %221 = vmatprep.subr.mxu0 %v94
    %222 = vmatpush1.msra.mxu0 %v93
    %223 = vmatprep.subr.mxu0 %v90
    %224 = vmatpush1.msra.mxu0 %v89
    %225 = vmatprep.subr.mxu0 %v86
    %226 = vmatpush1.msra.mxu0 %v85
    %227 = vmatprep.subr.mxu0 %v82
    %228 = vmatpush1.msra.mxu0 %v81
    %229 = vmatprep.subr.mxu0 %v78
    %230 = vmatpush1.msra.mxu0 %v77
    %231 = vmatprep.subr.mxu0 %v74
    %232 = vmatpush1.msra.mxu0 %v73
    %233 = vmatprep.subr.mxu0 0.0
    %234 = vmatpush2.msra.mxu0 0.0
    %235 = vmatprep.subr.mxu0 0.0
    %236 = vmatpush2.msra.mxu0 0.0
    %237 = vmatprep.subr.mxu0 0.0
    %238 = vmatpush2.msra.mxu0 0.0
    %239 = vmatprep.subr.mxu0 0.0
    %240 = vmatpush2.msra.mxu0 0.0
    %241 = vmatprep.subr.mxu0 0.0
    %242 = vmatpush2.msra.mxu0 0.0
    %243 = vmatprep.subr.mxu0 0.0
    %244 = vmatpush2.msra.mxu0 0.0
    %245 = vmatprep.subr.mxu0 0.0
    %246 = vmatpush2.msra.mxu0 0.0
    %247 = vmatprep.subr.mxu0 0.0
    %248 = vmatpush2.msra.mxu0 0.0
    %249 = vmatprep.subr.mxu0 0.0
    %250 = vmatpush2.msra.mxu0 0.0
    %251 = vmatprep.subr.mxu0 0.0
    %252 = vmatpush2.msra.mxu0 0.0
    %253 = vmatprep.subr.mxu0 0.0
    %254 = vmatpush2.msra.mxu0 0.0
    %255 = vmatprep.subr.mxu0 0.0
    %256 = vmatpush2.msra.mxu0 0.0
    %257 = vmatprep.subr.mxu0 0.0
    %258 = vmatpush2.msra.mxu0 0.0
    %259 = vmatprep.subr.mxu0 0.0
    %260 = vmatpush2.msra.mxu0 0.0
    %261 = vmatprep.subr.mxu0 0.0
    %262 = vmatpush2.msra.mxu0 0.0
    %263 = vmatprep.subr.mxu0 0.0
    %264 = vmatpush2.msra.mxu0 0.0
    %265 = vmatprep.mubr.f32.mxu0 0.0
    %266 = vmatmul.mubr.f32.gmra.mxu0 %v119
    %v267 = vpop.f32.mrf.mxu0
    %v268 = vadd.f32 %v110, %v267
    %v269 = vpop.f32.mrf.mxu0
    %v270 = vadd.f32 %v110, %v269
    %271 = vmatprep.mubr.f32.mxu0 0.0
    %272 = vmatmul.mubr.f32.gmra.mxu0 %v122
    %v273 = vpop.f32.mrf.mxu0
    %v274 = vadd.f32 %v115, %v273
    %v275 = vpop.f32.mrf.mxu0
    %v276 = vadd.f32 %v115, %v275
    %277 = vdwg.mxu0
    %v278 = vmax.f32 %v191, 0.0
    %v279 = vmax.f32 %v193, 0.0
    %v280 = vmax.f32 %v268, 0.0
    %v281 = vmax.f32 %v270, 0.0
    %v282 = vmax.f32 %v197, 0.0
    %v283 = vmax.f32 %v199, 0.0
    %v284 = vmax.f32 %v274, 0.0
    %v285 = vmax.f32 %v276, 0.0
    %v286 = vmin.f32 %v278, 6.0
    %v287 = vmin.f32 %v279, 6.0
    %v288 = vmin.f32 %v280, 6.0
    %v289 = vmin.f32 %v281, 6.0
    %v290 = vmin.f32 %v282, 6.0
    %v291 = vmin.f32 %v283, 6.0
    %v292 = vmin.f32 %v284, 6.0
    %v293 = vmin.f32 %v285, 6.0
    %v294 = vld [vmem:[%s4] sm:$0xff]
    %v295 = vld [vmem:[%s4 + $0x8] sm:$0xff]
    %v296 = vld [vmem:[%s5] sm:$0xff]
    %v297 = vld [vmem:[%s5 + $0x8] sm:$0xff]
    %299 = vset.pattern.permute.xlu0 0
    %300 = vperm.xlu0 %299, %v296
    %v301 = vpop.permute.xlu0 %300
    %304 = vset.pattern.permute.xlu0 0
    %305 = vperm.xlu0 %304, %v297
    %v306 = vpop.permute.xlu0 %305
    %vm308 = vcmask 130048
    %v310 = vsel %vm308, %v294, 0
    %v313 = vsel %vm308, %v295, 0
    %315 = vmatprep.subr.mxu0 0.0
    %316 = vmatpush1.msra.mxu0 0.0
    %317 = vmatprep.subr.mxu0 0.0
    %318 = vmatpush1.msra.mxu0 0.0
    %319 = vmatprep.subr.mxu0 0.0
    %320 = vmatpush1.msra.mxu0 0.0
    %321 = vmatprep.subr.mxu0 0.0
    %322 = vmatpush1.msra.mxu0 0.0
    %323 = vmatprep.subr.mxu0 0.0
    %324 = vmatpush1.msra.mxu0 0.0
    %325 = vmatprep.subr.mxu0 0.0
    %326 = vmatpush1.msra.mxu0 0.0
    %327 = vmatprep.subr.mxu0 0.0
    %328 = vmatpush1.msra.mxu0 0.0
    %329 = vmatprep.subr.mxu0 0.0
    %330 = vmatpush1.msra.mxu0 0.0
    %331 = vmatprep.subr.mxu0 0.0
    %332 = vmatpush1.msra.mxu0 0.0
    %333 = vmatprep.subr.mxu0 0.0
    %334 = vmatpush1.msra.mxu0 0.0
    %335 = vmatprep.subr.mxu0 0.0
    %336 = vmatpush1.msra.mxu0 0.0
    %337 = vmatprep.subr.mxu0 0.0
    %338 = vmatpush1.msra.mxu0 0.0
    %339 = vmatprep.subr.mxu0 0.0
    %340 = vmatpush1.msra.mxu0 0.0
    %341 = vmatprep.subr.mxu0 0.0
    %342 = vmatpush1.msra.mxu0 0.0
    %343 = vmatprep.subr.mxu0 %v291
    %344 = vmatpush1.msra.mxu0 %v290
    %345 = vmatprep.subr.mxu0 %v287
    %346 = vmatpush1.msra.mxu0 %v286
    %347 = vmatprep.subr.mxu0 0.0
    %348 = vmatpush2.msra.mxu0 0.0
    %349 = vmatprep.subr.mxu0 0.0
    %350 = vmatpush2.msra.mxu0 0.0
    %351 = vmatprep.subr.mxu0 0.0
    %352 = vmatpush2.msra.mxu0 0.0
    %353 = vmatprep.subr.mxu0 0.0
    %354 = vmatpush2.msra.mxu0 0.0
    %355 = vmatprep.subr.mxu0 0.0
    %356 = vmatpush2.msra.mxu0 0.0
    %357 = vmatprep.subr.mxu0 0.0
    %358 = vmatpush2.msra.mxu0 0.0
    %359 = vmatprep.subr.mxu0 0.0
    %360 = vmatpush2.msra.mxu0 0.0
    %361 = vmatprep.subr.mxu0 0.0
    %362 = vmatpush2.msra.mxu0 0.0
    %363 = vmatprep.subr.mxu0 0.0
    %364 = vmatpush2.msra.mxu0 0.0
    %365 = vmatprep.subr.mxu0 0.0
    %366 = vmatpush2.msra.mxu0 0.0
    %367 = vmatprep.subr.mxu0 0.0
    %368 = vmatpush2.msra.mxu0 0.0
    %369 = vmatprep.subr.mxu0 0.0
    %370 = vmatpush2.msra.mxu0 0.0
    %371 = vmatprep.subr.mxu0 0.0
    %372 = vmatpush2.msra.mxu0 0.0
    %373 = vmatprep.subr.mxu0 0.0
    %374 = vmatpush2.msra.mxu0 0.0
    %375 = vmatprep.subr.mxu0 0.0
    %376 = vmatpush2.msra.mxu0 0.0
    %377 = vmatprep.subr.mxu0 0.0
    %378 = vmatpush2.msra.mxu0 0.0
    %379 = vmatprep.mubr.f32.mxu0 0.0
    %380 = vmatmul.mubr.f32.gmra.mxu0 %v310
    %v381 = vpop.f32.mrf.mxu0
    %v382 = vadd.f32 %v301, %v381
    %v383 = vpop.f32.mrf.mxu0
    %v384 = vadd.f32 %v301, %v383
    %385 = vmatprep.mubr.f32.mxu0 0.0
    %386 = vmatmul.mubr.f32.gmra.mxu0 %v313
    %v387 = vpop.f32.mrf.mxu0
    %v388 = vadd.f32 %v306, %v387
    %v389 = vpop.f32.mrf.mxu0
    %v390 = vadd.f32 %v306, %v389
    %391 = vdwg.mxu0
    %392 = vmatprep.subr.mxu0 0.0
    %393 = vmatpush1.msra.mxu0 0.0
    %394 = vmatprep.subr.mxu0 0.0
    %395 = vmatpush1.msra.mxu0 0.0
    %396 = vmatprep.subr.mxu0 0.0
    %397 = vmatpush1.msra.mxu0 0.0
    %398 = vmatprep.subr.mxu0 0.0
    %399 = vmatpush1.msra.mxu0 0.0
    %400 = vmatprep.subr.mxu0 0.0
    %401 = vmatpush1.msra.mxu0 0.0
    %402 = vmatprep.subr.mxu0 0.0
    %403 = vmatpush1.msra.mxu0 0.0
    %404 = vmatprep.subr.mxu0 0.0
    %405 = vmatpush1.msra.mxu0 0.0
    %406 = vmatprep.subr.mxu0 0.0
    %407 = vmatpush1.msra.mxu0 0.0
    %408 = vmatprep.subr.mxu0 0.0
    %409 = vmatpush1.msra.mxu0 0.0
    %410 = vmatprep.subr.mxu0 0.0
    %411 = vmatpush1.msra.mxu0 0.0
    %412 = vmatprep.subr.mxu0 0.0
    %413 = vmatpush1.msra.mxu0 0.0
    %414 = vmatprep.subr.mxu0 0.0
    %415 = vmatpush1.msra.mxu0 0.0
    %416 = vmatprep.subr.mxu0 0.0
    %417 = vmatpush1.msra.mxu0 0.0
    %418 = vmatprep.subr.mxu0 0.0
    %419 = vmatpush1.msra.mxu0 0.0
    %420 = vmatprep.subr.mxu0 %v293
    %421 = vmatpush1.msra.mxu0 %v292
    %422 = vmatprep.subr.mxu0 %v289
    %423 = vmatpush1.msra.mxu0 %v288
    %424 = vmatprep.subr.mxu0 0.0
    %425 = vmatpush2.msra.mxu0 0.0
    %426 = vmatprep.subr.mxu0 0.0
    %427 = vmatpush2.msra.mxu0 0.0
    %428 = vmatprep.subr.mxu0 0.0
    %429 = vmatpush2.msra.mxu0 0.0
    %430 = vmatprep.subr.mxu0 0.0
    %431 = vmatpush2.msra.mxu0 0.0
    %432 = vmatprep.subr.mxu0 0.0
    %433 = vmatpush2.msra.mxu0 0.0
    %434 = vmatprep.subr.mxu0 0.0
    %435 = vmatpush2.msra.mxu0 0.0
    %436 = vmatprep.subr.mxu0 0.0
    %437 = vmatpush2.msra.mxu0 0.0
    %438 = vmatprep.subr.mxu0 0.0
    %439 = vmatpush2.msra.mxu0 0.0
    %440 = vmatprep.subr.mxu0 0.0
    %441 = vmatpush2.msra.mxu0 0.0
    %442 = vmatprep.subr.mxu0 0.0
    %443 = vmatpush2.msra.mxu0 0.0
    %444 = vmatprep.subr.mxu0 0.0
    %445 = vmatpush2.msra.mxu0 0.0
    %446 = vmatprep.subr.mxu0 0.0
    %447 = vmatpush2.msra.mxu0 0.0
    %448 = vmatprep.subr.mxu0 0.0
    %449 = vmatpush2.msra.mxu0 0.0
    %450 = vmatprep.subr.mxu0 0.0
    %451 = vmatpush2.msra.mxu0 0.0
    %452 = vmatprep.subr.mxu0 0.0
    %453 = vmatpush2.msra.mxu0 0.0
    %454 = vmatprep.subr.mxu0 0.0
    %455 = vmatpush2.msra.mxu0 0.0
    %456 = vmatprep.mubr.f32.mxu0 0.0
    %457 = vmatmul.mubr.f32.gmra.mxu0 %v310
    %v458 = vpop.f32.mrf.mxu0
    %v459 = vadd.f32 %v301, %v458
    %v460 = vpop.f32.mrf.mxu0
    %v461 = vadd.f32 %v301, %v460
    %462 = vmatprep.mubr.f32.mxu0 0.0
    %463 = vmatmul.mubr.f32.gmra.mxu0 %v313
    %v464 = vpop.f32.mrf.mxu0
    %v465 = vadd.f32 %v306, %v464
    %v466 = vpop.f32.mrf.mxu0
    %v467 = vadd.f32 %v306, %v466
    %468 = vdwg.mxu0
    %v469 = vmax.f32 %v382, 0.0
    %v470 = vmax.f32 %v384, 0.0
    %v471 = vmax.f32 %v459, 0.0
    %v472 = vmax.f32 %v461, 0.0
    %v473 = vmax.f32 %v388, 0.0
    %v474 = vmax.f32 %v390, 0.0
    %v475 = vmax.f32 %v465, 0.0
    %v476 = vmax.f32 %v467, 0.0
    %v477 = vmin.f32 %v469, 6.0
    %v478 = vmin.f32 %v470, 6.0
    %v479 = vmin.f32 %v471, 6.0
    %v480 = vmin.f32 %v472, 6.0
    %v481 = vmin.f32 %v473, 6.0
    %v482 = vmin.f32 %v474, 6.0
    %v483 = vmin.f32 %v475, 6.0
    %v484 = vmin.f32 %v476, 6.0
    %485 = vrot.lane.b32.xlu0 %v477, 17
    %v486 = vpop.permute.xlu0 %485
    %487 = vrot.lane.b32.xlu0 %v481, 17
    %v488 = vpop.permute.xlu0 %487
    %489 = vrot.lane.b32.xlu0 %v478, 17
    %v490 = vpop.permute.xlu0 %489
    %491 = vrot.lane.b32.xlu0 %v482, 17
    %v492 = vpop.permute.xlu0 %491
    %493 = vrot.lane.b32.xlu0 %v479, 17
    %v494 = vpop.permute.xlu0 %493
    %495 = vrot.lane.b32.xlu0 %v483, 17
    %v496 = vpop.permute.xlu0 %495
    %497 = vrot.lane.b32.xlu0 %v480, 17
    %v498 = vpop.permute.xlu0 %497
    %499 = vrot.lane.b32.xlu0 %v484, 17
    %v500 = vpop.permute.xlu0 %499
    %v501 = vlaneseq
    %v502 = vand.u32 %v501, 127
    %vm503 = vcmp.lt.s32.totalorder %v502, 17
    %v504 = vsel %vm503, %v494, %v498
    %v505 = vsel %vm503, %v496, %v500
    %v506 = vsel %vm503, %v490, %v494
    %v507 = vsel %vm503, %v492, %v496
    %v508 = vsel %vm503, %v486, %v490
    %v509 = vsel %vm503, %v488, %v492
    %v510 = vsel %vm503, %v498, %v486
    %v511 = vsel %vm503, %v500, %v488
    %v512 = vld [vmem:[#allocation5] ss:$8 sm:$0xf]
    %v514 = vlaneseq
    %v515 = vshrl.u32 %v514, 7
    %v516 = vsub.s32 0, %v515
    %v517 = vrot.slane %v512, %v516
    %v518 = vlaneseq
    %v519 = vshrl.u32 %v518, 7
    %v520 = vsub.s32 1, %v519
    %v521 = vrot.slane %v512, %v520
    %v522 = vlaneseq
    %v523 = vshrl.u32 %v522, 7
    %v524 = vsub.s32 2, %v523
    %v525 = vrot.slane %v512, %v524
    %v526 = vlaneseq
    %v527 = vshrl.u32 %v526, 7
    %v528 = vsub.s32 3, %v527
    %v529 = vrot.slane %v512, %v528
    %v534 = vmul.f32 %v510, %v517
    %v535 = vmul.f32 %v508, %v521
    %v536 = vmul.f32 %v506, %v525
    %v537 = vmul.f32 %v504, %v529
    %v538 = vmul.f32 %v511, %v517
    %v539 = vmul.f32 %v509, %v521
    %v540 = vmul.f32 %v507, %v525
    %v541 = vmul.f32 %v505, %v529
    %v542 = vld [vmem:[#allocation7] sm:$0xff]
    %543 = vrot.lane.b32.xlu0 %v477, 16
    %v544 = vpop.permute.xlu0 %543
    %545 = vrot.lane.b32.xlu0 %v481, 16
    %v546 = vpop.permute.xlu0 %545
    %547 = vrot.lane.b32.xlu0 %v478, 16
    %v548 = vpop.permute.xlu0 %547
    %549 = vrot.lane.b32.xlu0 %v482, 16
    %v550 = vpop.permute.xlu0 %549
    %551 = vrot.lane.b32.xlu0 %v479, 16
    %v552 = vpop.permute.xlu0 %551
    %553 = vrot.lane.b32.xlu0 %v483, 16
    %v554 = vpop.permute.xlu0 %553
    %555 = vrot.lane.b32.xlu0 %v480, 16
    %v556 = vpop.permute.xlu0 %555
    %557 = vrot.lane.b32.xlu0 %v484, 16
    %v558 = vpop.permute.xlu0 %557
    %vm559 = vcmp.lt.s32.totalorder %v502, 16
    %v560 = vsel %vm559, %v552, %v556
    %v561 = vsel %vm559, %v554, %v558
    %v562 = vsel %vm559, %v548, %v552
    %v563 = vsel %vm559, %v550, %v554
    %v564 = vsel %vm559, %v544, %v548
    %v565 = vsel %vm559, %v546, %v550
    %v566 = vsel %vm559, %v556, %v544
    %v567 = vsel %vm559, %v558, %v546
    %s568 = scalar_lea.vmem [#allocation5], 1
    %v569 = vld [vmem:[%s568] ss:$8 sm:$0xf]
    %v571 = vlaneseq
    %v572 = vshrl.u32 %v571, 7
    %v573 = vsub.s32 0, %v572
    %v574 = vrot.slane %v569, %v573
    %v575 = vlaneseq
    %v576 = vshrl.u32 %v575, 7
    %v577 = vsub.s32 1, %v576
    %v578 = vrot.slane %v569, %v577
    %v579 = vlaneseq
    %v580 = vshrl.u32 %v579, 7
    %v581 = vsub.s32 2, %v580
    %v582 = vrot.slane %v569, %v581
    %v583 = vlaneseq
    %v584 = vshrl.u32 %v583, 7
    %v585 = vsub.s32 3, %v584
    %v586 = vrot.slane %v569, %v585
    %v591 = vmul.f32 %v566, %v574
    %v592 = vmul.f32 %v564, %v578
    %v593 = vmul.f32 %v562, %v582
    %v594 = vmul.f32 %v560, %v586
    %v595 = vmul.f32 %v567, %v574
    %v596 = vmul.f32 %v565, %v578
    %v597 = vmul.f32 %v563, %v582
    %v598 = vmul.f32 %v561, %v586
    %s599 = scalar_lea.vmem [#allocation7], 8
    %v600 = vld [vmem:[%s599] sm:$0xff]
    %v602 = vsel %vm308, %v600, 0
    %604 = vmatprep.subr.mxu0 0.0
    %605 = vmatpush1.msra.mxu0 0.0
    %606 = vmatprep.subr.mxu0 0.0
    %607 = vmatpush1.msra.mxu0 0.0
    %608 = vmatprep.subr.mxu0 0.0
    %609 = vmatpush1.msra.mxu0 0.0
    %610 = vmatprep.subr.mxu0 0.0
    %611 = vmatpush1.msra.mxu0 0.0
    %612 = vmatprep.subr.mxu0 0.0
    %613 = vmatpush1.msra.mxu0 0.0
    %614 = vmatprep.subr.mxu0 0.0
    %615 = vmatpush1.msra.mxu0 0.0
    %616 = vmatprep.subr.mxu0 0.0
    %617 = vmatpush1.msra.mxu0 0.0
    %618 = vmatprep.subr.mxu0 0.0
    %619 = vmatpush1.msra.mxu0 0.0
    %620 = vmatprep.subr.mxu0 0.0
    %621 = vmatpush1.msra.mxu0 0.0
    %622 = vmatprep.subr.mxu0 0.0
    %623 = vmatpush1.msra.mxu0 0.0
    %624 = vmatprep.subr.mxu0 0.0
    %625 = vmatpush1.msra.mxu0 0.0
    %626 = vmatprep.subr.mxu0 0.0
    %627 = vmatpush1.msra.mxu0 0.0
    %628 = vmatprep.subr.mxu0 0.0
    %629 = vmatpush1.msra.mxu0 0.0
    %630 = vmatprep.subr.mxu0 0.0
    %631 = vmatpush1.msra.mxu0 0.0
    %632 = vmatprep.subr.mxu0 %v596
    %633 = vmatpush1.msra.mxu0 %v595
    %634 = vmatprep.subr.mxu0 %v592
    %635 = vmatpush1.msra.mxu0 %v591
    %636 = vmatprep.subr.mxu0 0.0
    %637 = vmatpush2.msra.mxu0 0.0
    %638 = vmatprep.subr.mxu0 0.0
    %639 = vmatpush2.msra.mxu0 0.0
    %640 = vmatprep.subr.mxu0 0.0
    %641 = vmatpush2.msra.mxu0 0.0
    %642 = vmatprep.subr.mxu0 0.0
    %643 = vmatpush2.msra.mxu0 0.0
    %644 = vmatprep.subr.mxu0 0.0
    %645 = vmatpush2.msra.mxu0 0.0
    %646 = vmatprep.subr.mxu0 0.0
    %647 = vmatpush2.msra.mxu0 0.0
    %648 = vmatprep.subr.mxu0 0.0
    %649 = vmatpush2.msra.mxu0 0.0
    %650 = vmatprep.subr.mxu0 0.0
    %651 = vmatpush2.msra.mxu0 0.0
    %652 = vmatprep.subr.mxu0 0.0
    %653 = vmatpush2.msra.mxu0 0.0
    %654 = vmatprep.subr.mxu0 0.0
    %655 = vmatpush2.msra.mxu0 0.0
    %656 = vmatprep.subr.mxu0 0.0
    %657 = vmatpush2.msra.mxu0 0.0
    %658 = vmatprep.subr.mxu0 0.0
    %659 = vmatpush2.msra.mxu0 0.0
    %660 = vmatprep.subr.mxu0 0.0
    %661 = vmatpush2.msra.mxu0 0.0
    %662 = vmatprep.subr.mxu0 0.0
    %663 = vmatpush2.msra.mxu0 0.0
    %664 = vmatprep.subr.mxu0 0.0
    %665 = vmatpush2.msra.mxu0 0.0
    %666 = vmatprep.subr.mxu0 0.0
    %667 = vmatpush2.msra.mxu0 0.0
    %668 = vmatprep.mubr.f32.mxu0 0.0
    %669 = vmatmul.mubr.f32.gmra.mxu0 %v602
    %v670 = vpop.f32.mrf.mxu0
    %v671 = vadd.f32 0.0, %v670
    %v672 = vpop.f32.mrf.mxu0
    %v673 = vadd.f32 0.0, %v672
    %674 = vdwg.mxu0
    %675 = vmatprep.subr.mxu0 0.0
    %676 = vmatpush1.msra.mxu0 0.0
    %677 = vmatprep.subr.mxu0 0.0
    %678 = vmatpush1.msra.mxu0 0.0
    %679 = vmatprep.subr.mxu0 0.0
    %680 = vmatpush1.msra.mxu0 0.0
    %681 = vmatprep.subr.mxu0 0.0
    %682 = vmatpush1.msra.mxu0 0.0
    %683 = vmatprep.subr.mxu0 0.0
    %684 = vmatpush1.msra.mxu0 0.0
    %685 = vmatprep.subr.mxu0 0.0
    %686 = vmatpush1.msra.mxu0 0.0
    %687 = vmatprep.subr.mxu0 0.0
    %688 = vmatpush1.msra.mxu0 0.0
    %689 = vmatprep.subr.mxu0 0.0
    %690 = vmatpush1.msra.mxu0 0.0
    %691 = vmatprep.subr.mxu0 0.0
    %692 = vmatpush1.msra.mxu0 0.0
    %693 = vmatprep.subr.mxu0 0.0
    %694 = vmatpush1.msra.mxu0 0.0
    %695 = vmatprep.subr.mxu0 0.0
    %696 = vmatpush1.msra.mxu0 0.0
    %697 = vmatprep.subr.mxu0 0.0
    %698 = vmatpush1.msra.mxu0 0.0
    %699 = vmatprep.subr.mxu0 0.0
    %700 = vmatpush1.msra.mxu0 0.0
    %701 = vmatprep.subr.mxu0 0.0
    %702 = vmatpush1.msra.mxu0 0.0
    %703 = vmatprep.subr.mxu0 %v598
    %704 = vmatpush1.msra.mxu0 %v597
    %705 = vmatprep.subr.mxu0 %v594
    %706 = vmatpush1.msra.mxu0 %v593
    %707 = vmatprep.subr.mxu0 0.0
    %708 = vmatpush2.msra.mxu0 0.0
    %709 = vmatprep.subr.mxu0 0.0
    %710 = vmatpush2.msra.mxu0 0.0
    %711 = vmatprep.subr.mxu0 0.0
    %712 = vmatpush2.msra.mxu0 0.0
    %713 = vmatprep.subr.mxu0 0.0
    %714 = vmatpush2.msra.mxu0 0.0
    %715 = vmatprep.subr.mxu0 0.0
    %716 = vmatpush2.msra.mxu0 0.0
    %717 = vmatprep.subr.mxu0 0.0
    %718 = vmatpush2.msra.mxu0 0.0
    %719 = vmatprep.subr.mxu0 0.0
    %720 = vmatpush2.msra.mxu0 0.0
    %721 = vmatprep.subr.mxu0 0.0
    %722 = vmatpush2.msra.mxu0 0.0
    %723 = vmatprep.subr.mxu0 0.0
    %724 = vmatpush2.msra.mxu0 0.0
    %725 = vmatprep.subr.mxu0 0.0
    %726 = vmatpush2.msra.mxu0 0.0
    %727 = vmatprep.subr.mxu0 0.0
    %728 = vmatpush2.msra.mxu0 0.0
    %729 = vmatprep.subr.mxu0 0.0
    %730 = vmatpush2.msra.mxu0 0.0
    %731 = vmatprep.subr.mxu0 0.0
    %732 = vmatpush2.msra.mxu0 0.0
    %733 = vmatprep.subr.mxu0 0.0
    %734 = vmatpush2.msra.mxu0 0.0
    %735 = vmatprep.subr.mxu0 0.0
    %736 = vmatpush2.msra.mxu0 0.0
    %737 = vmatprep.subr.mxu0 0.0
    %738 = vmatpush2.msra.mxu0 0.0
    %739 = vmatprep.mubr.f32.mxu0 0.0
    %740 = vmatmul.mubr.f32.gmra.mxu0 %v602
    %v741 = vpop.f32.mrf.mxu0
    %v742 = vadd.f32 0.0, %v741
    %v743 = vpop.f32.mrf.mxu0
    %v744 = vadd.f32 0.0, %v743
    %745 = vdwg.mxu0
    %v747 = vsel %vm308, %v542, 0
    %749 = vmatprep.subr.mxu0 0.0
    %750 = vmatpush1.msra.mxu0 0.0
    %751 = vmatprep.subr.mxu0 0.0
    %752 = vmatpush1.msra.mxu0 0.0
    %753 = vmatprep.subr.mxu0 0.0
    %754 = vmatpush1.msra.mxu0 0.0
    %755 = vmatprep.subr.mxu0 0.0
    %756 = vmatpush1.msra.mxu0 0.0
    %757 = vmatprep.subr.mxu0 0.0
    %758 = vmatpush1.msra.mxu0 0.0
    %759 = vmatprep.subr.mxu0 0.0
    %760 = vmatpush1.msra.mxu0 0.0
    %761 = vmatprep.subr.mxu0 0.0
    %762 = vmatpush1.msra.mxu0 0.0
    %763 = vmatprep.subr.mxu0 0.0
    %764 = vmatpush1.msra.mxu0 0.0
    %765 = vmatprep.subr.mxu0 0.0
    %766 = vmatpush1.msra.mxu0 0.0
    %767 = vmatprep.subr.mxu0 0.0
    %768 = vmatpush1.msra.mxu0 0.0
    %769 = vmatprep.subr.mxu0 0.0
    %770 = vmatpush1.msra.mxu0 0.0
    %771 = vmatprep.subr.mxu0 0.0
    %772 = vmatpush1.msra.mxu0 0.0
    %773 = vmatprep.subr.mxu0 0.0
    %774 = vmatpush1.msra.mxu0 0.0
    %775 = vmatprep.subr.mxu0 0.0
    %776 = vmatpush1.msra.mxu0 0.0
    %777 = vmatprep.subr.mxu0 %v539
    %778 = vmatpush1.msra.mxu0 %v538
    %779 = vmatprep.subr.mxu0 %v535
    %780 = vmatpush1.msra.mxu0 %v534
    %781 = vmatprep.subr.mxu0 0.0
    %782 = vmatpush2.msra.mxu0 0.0
    %783 = vmatprep.subr.mxu0 0.0
    %784 = vmatpush2.msra.mxu0 0.0
    %785 = vmatprep.subr.mxu0 0.0
    %786 = vmatpush2.msra.mxu0 0.0
    %787 = vmatprep.subr.mxu0 0.0
    %788 = vmatpush2.msra.mxu0 0.0
    %789 = vmatprep.subr.mxu0 0.0
    %790 = vmatpush2.msra.mxu0 0.0
    %791 = vmatprep.subr.mxu0 0.0
    %792 = vmatpush2.msra.mxu0 0.0
    %793 = vmatprep.subr.mxu0 0.0
    %794 = vmatpush2.msra.mxu0 0.0
    %795 = vmatprep.subr.mxu0 0.0
    %796 = vmatpush2.msra.mxu0 0.0
    %797 = vmatprep.subr.mxu0 0.0
    %798 = vmatpush2.msra.mxu0 0.0
    %799 = vmatprep.subr.mxu0 0.0
    %800 = vmatpush2.msra.mxu0 0.0
    %801 = vmatprep.subr.mxu0 0.0
    %802 = vmatpush2.msra.mxu0 0.0
    %803 = vmatprep.subr.mxu0 0.0
    %804 = vmatpush2.msra.mxu0 0.0
    %805 = vmatprep.subr.mxu0 0.0
    %806 = vmatpush2.msra.mxu0 0.0
    %807 = vmatprep.subr.mxu0 0.0
    %808 = vmatpush2.msra.mxu0 0.0
    %809 = vmatprep.subr.mxu0 0.0
    %810 = vmatpush2.msra.mxu0 0.0
    %811 = vmatprep.subr.mxu0 0.0
    %812 = vmatpush2.msra.mxu0 0.0
    %813 = vmatprep.mubr.f32.mxu0 0.0
    %814 = vmatmul.mubr.f32.gmra.mxu0 %v747
    %v815 = vpop.f32.mrf.mxu0
    %v816 = vadd.f32 %v671, %v815
    %v817 = vpop.f32.mrf.mxu0
    %v818 = vadd.f32 %v673, %v817
    %819 = vdwg.mxu0
    %820 = vmatprep.subr.mxu0 0.0
    %821 = vmatpush1.msra.mxu0 0.0
    %822 = vmatprep.subr.mxu0 0.0
    %823 = vmatpush1.msra.mxu0 0.0
    %824 = vmatprep.subr.mxu0 0.0
    %825 = vmatpush1.msra.mxu0 0.0
    %826 = vmatprep.subr.mxu0 0.0
    %827 = vmatpush1.msra.mxu0 0.0
    %828 = vmatprep.subr.mxu0 0.0
    %829 = vmatpush1.msra.mxu0 0.0
    %830 = vmatprep.subr.mxu0 0.0
    %831 = vmatpush1.msra.mxu0 0.0
    %832 = vmatprep.subr.mxu0 0.0
    %833 = vmatpush1.msra.mxu0 0.0
    %834 = vmatprep.subr.mxu0 0.0
    %835 = vmatpush1.msra.mxu0 0.0
    %836 = vmatprep.subr.mxu0 0.0
    %837 = vmatpush1.msra.mxu0 0.0
    %838 = vmatprep.subr.mxu0 0.0
    %839 = vmatpush1.msra.mxu0 0.0
    %840 = vmatprep.subr.mxu0 0.0
    %841 = vmatpush1.msra.mxu0 0.0
    %842 = vmatprep.subr.mxu0 0.0
    %843 = vmatpush1.msra.mxu0 0.0
    %844 = vmatprep.subr.mxu0 0.0
    %845 = vmatpush1.msra.mxu0 0.0
    %846 = vmatprep.subr.mxu0 0.0
    %847 = vmatpush1.msra.mxu0 0.0
    %848 = vmatprep.subr.mxu0 %v541
    %849 = vmatpush1.msra.mxu0 %v540
    %850 = vmatprep.subr.mxu0 %v537
    %851 = vmatpush1.msra.mxu0 %v536
    %852 = vmatprep.subr.mxu0 0.0
    %853 = vmatpush2.msra.mxu0 0.0
    %854 = vmatprep.subr.mxu0 0.0
    %855 = vmatpush2.msra.mxu0 0.0
    %856 = vmatprep.subr.mxu0 0.0
    %857 = vmatpush2.msra.mxu0 0.0
    %858 = vmatprep.subr.mxu0 0.0
    %859 = vmatpush2.msra.mxu0 0.0
    %860 = vmatprep.subr.mxu0 0.0
    %861 = vmatpush2.msra.mxu0 0.0
    %862 = vmatprep.subr.mxu0 0.0
    %863 = vmatpush2.msra.mxu0 0.0
    %864 = vmatprep.subr.mxu0 0.0
    %865 = vmatpush2.msra.mxu0 0.0
    %866 = vmatprep.subr.mxu0 0.0
    %867 = vmatpush2.msra.mxu0 0.0
    %868 = vmatprep.subr.mxu0 0.0
    %869 = vmatpush2.msra.mxu0 0.0
    %870 = vmatprep.subr.mxu0 0.0
    %871 = vmatpush2.msra.mxu0 0.0
    %872 = vmatprep.subr.mxu0 0.0
    %873 = vmatpush2.msra.mxu0 0.0
    %874 = vmatprep.subr.mxu0 0.0
    %875 = vmatpush2.msra.mxu0 0.0
    %876 = vmatprep.subr.mxu0 0.0
    %877 = vmatpush2.msra.mxu0 0.0
    %878 = vmatprep.subr.mxu0 0.0
    %879 = vmatpush2.msra.mxu0 0.0
    %880 = vmatprep.subr.mxu0 0.0
    %881 = vmatpush2.msra.mxu0 0.0
    %882 = vmatprep.subr.mxu0 0.0
    %883 = vmatpush2.msra.mxu0 0.0
    %884 = vmatprep.mubr.f32.mxu0 0.0
    %885 = vmatmul.mubr.f32.gmra.mxu0 %v747
    %v886 = vpop.f32.mrf.mxu0
    %v887 = vadd.f32 %v742, %v886
    %v888 = vpop.f32.mrf.mxu0
    %v889 = vadd.f32 %v744, %v888
    %890 = vdwg.mxu0
    %891 = vrot.lane.b32.xlu0 %v477, 15
    %v892 = vpop.permute.xlu0 %891
    %893 = vrot.lane.b32.xlu0 %v481, 15
    %v894 = vpop.permute.xlu0 %893
    %895 = vrot.lane.b32.xlu0 %v478, 15
    %v896 = vpop.permute.xlu0 %895
    %897 = vrot.lane.b32.xlu0 %v482, 15
    %v898 = vpop.permute.xlu0 %897
    %899 = vrot.lane.b32.xlu0 %v479, 15
    %v900 = vpop.permute.xlu0 %899
    %901 = vrot.lane.b32.xlu0 %v483, 15
    %v902 = vpop.permute.xlu0 %901
    %903 = vrot.lane.b32.xlu0 %v480, 15
    %v904 = vpop.permute.xlu0 %903
    %905 = vrot.lane.b32.xlu0 %v484, 15
    %v906 = vpop.permute.xlu0 %905
    %vm907 = vcmp.lt.s32.totalorder %v502, 15
    %v908 = vsel %vm907, %v900, %v904
    %v909 = vsel %vm907, %v902, %v906
    %v910 = vsel %vm907, %v896, %v900
    %v911 = vsel %vm907, %v898, %v902
    %v912 = vsel %vm907, %v892, %v896
    %v913 = vsel %vm907, %v894, %v898
    %v914 = vsel %vm907, %v904, %v892
    %v915 = vsel %vm907, %v906, %v894
    %s916 = scalar_lea.vmem [#allocation5], 2
    %v917 = vld [vmem:[%s916] ss:$8 sm:$0xf]
    %v919 = vlaneseq
    %v920 = vshrl.u32 %v919, 7
    %v921 = vsub.s32 0, %v920
    %v922 = vrot.slane %v917, %v921
    %v923 = vlaneseq
    %v924 = vshrl.u32 %v923, 7
    %v925 = vsub.s32 1, %v924
    %v926 = vrot.slane %v917, %v925
    %v927 = vlaneseq
    %v928 = vshrl.u32 %v927, 7
    %v929 = vsub.s32 2, %v928
    %v930 = vrot.slane %v917, %v929
    %v931 = vlaneseq
    %v932 = vshrl.u32 %v931, 7
    %v933 = vsub.s32 3, %v932
    %v934 = vrot.slane %v917, %v933
    %v939 = vmul.f32 %v914, %v922
    %v940 = vmul.f32 %v912, %v926
    %v941 = vmul.f32 %v910, %v930
    %v942 = vmul.f32 %v908, %v934
    %v943 = vmul.f32 %v915, %v922
    %v944 = vmul.f32 %v913, %v926
    %v945 = vmul.f32 %v911, %v930
    %v946 = vmul.f32 %v909, %v934
    %s947 = scalar_lea.vmem [#allocation7], 16
    %v948 = vld [vmem:[%s947] sm:$0xff]
    %v950 = vsel %vm308, %v948, 0
    %952 = vmatprep.subr.mxu0 0.0
    %953 = vmatpush1.msra.mxu0 0.0
    %954 = vmatprep.subr.mxu0 0.0
    %955 = vmatpush1.msra.mxu0 0.0
    %956 = vmatprep.subr.mxu0 0.0
    %957 = vmatpush1.msra.mxu0 0.0
    %958 = vmatprep.subr.mxu0 0.0
    %959 = vmatpush1.msra.mxu0 0.0
    %960 = vmatprep.subr.mxu0 0.0
    %961 = vmatpush1.msra.mxu0 0.0
    %962 = vmatprep.subr.mxu0 0.0
    %963 = vmatpush1.msra.mxu0 0.0
    %964 = vmatprep.subr.mxu0 0.0
    %965 = vmatpush1.msra.mxu0 0.0
    %966 = vmatprep.subr.mxu0 0.0
    %967 = vmatpush1.msra.mxu0 0.0
    %968 = vmatprep.subr.mxu0 0.0
    %969 = vmatpush1.msra.mxu0 0.0
    %970 = vmatprep.subr.mxu0 0.0
    %971 = vmatpush1.msra.mxu0 0.0
    %972 = vmatprep.subr.mxu0 0.0
    %973 = vmatpush1.msra.mxu0 0.0
    %974 = vmatprep.subr.mxu0 0.0
    %975 = vmatpush1.msra.mxu0 0.0
    %976 = vmatprep.subr.mxu0 0.0
    %977 = vmatpush1.msra.mxu0 0.0
    %978 = vmatprep.subr.mxu0 0.0
    %979 = vmatpush1.msra.mxu0 0.0
    %980 = vmatprep.subr.mxu0 %v944
    %981 = vmatpush1.msra.mxu0 %v943
    %982 = vmatprep.subr.mxu0 %v940
    %983 = vmatpush1.msra.mxu0 %v939
    %984 = vmatprep.subr.mxu0 0.0
    %985 = vmatpush2.msra.mxu0 0.0
    %986 = vmatprep.subr.mxu0 0.0
    %987 = vmatpush2.msra.mxu0 0.0
    %988 = vmatprep.subr.mxu0 0.0
    %989 = vmatpush2.msra.mxu0 0.0
    %990 = vmatprep.subr.mxu0 0.0
    %991 = vmatpush2.msra.mxu0 0.0
    %992 = vmatprep.subr.mxu0 0.0
    %993 = vmatpush2.msra.mxu0 0.0
    %994 = vmatprep.subr.mxu0 0.0
    %995 = vmatpush2.msra.mxu0 0.0
    %996 = vmatprep.subr.mxu0 0.0
    %997 = vmatpush2.msra.mxu0 0.0
    %998 = vmatprep.subr.mxu0 0.0
    %999 = vmatpush2.msra.mxu0 0.0
    %1000 = vmatprep.subr.mxu0 0.0
    %1001 = vmatpush2.msra.mxu0 0.0
    %1002 = vmatprep.subr.mxu0 0.0
    %1003 = vmatpush2.msra.mxu0 0.0
    %1004 = vmatprep.subr.mxu0 0.0
    %1005 = vmatpush2.msra.mxu0 0.0
    %1006 = vmatprep.subr.mxu0 0.0
    %1007 = vmatpush2.msra.mxu0 0.0
    %1008 = vmatprep.subr.mxu0 0.0
    %1009 = vmatpush2.msra.mxu0 0.0
    %1010 = vmatprep.subr.mxu0 0.0
    %1011 = vmatpush2.msra.mxu0 0.0
    %1012 = vmatprep.subr.mxu0 0.0
    %1013 = vmatpush2.msra.mxu0 0.0
    %1014 = vmatprep.subr.mxu0 0.0
    %1015 = vmatpush2.msra.mxu0 0.0
    %1016 = vmatprep.mubr.f32.mxu0 0.0
    %1017 = vmatmul.mubr.f32.gmra.mxu0 %v950
    %v1018 = vpop.f32.mrf.mxu0
    %v1019 = vadd.f32 0.0, %v1018
    %v1020 = vpop.f32.mrf.mxu0
    %v1021 = vadd.f32 0.0, %v1020
    %1022 = vdwg.mxu0
    %1023 = vmatprep.subr.mxu0 0.0
    %1024 = vmatpush1.msra.mxu0 0.0
    %1025 = vmatprep.subr.mxu0 0.0
    %1026 = vmatpush1.msra.mxu0 0.0
    %1027 = vmatprep.subr.mxu0 0.0
    %1028 = vmatpush1.msra.mxu0 0.0
    %1029 = vmatprep.subr.mxu0 0.0
    %1030 = vmatpush1.msra.mxu0 0.0
    %1031 = vmatprep.subr.mxu0 0.0
    %1032 = vmatpush1.msra.mxu0 0.0
    %1033 = vmatprep.subr.mxu0 0.0
    %1034 = vmatpush1.msra.mxu0 0.0
    %1035 = vmatprep.subr.mxu0 0.0
    %1036 = vmatpush1.msra.mxu0 0.0
    %1037 = vmatprep.subr.mxu0 0.0
    %1038 = vmatpush1.msra.mxu0 0.0
    %1039 = vmatprep.subr.mxu0 0.0
    %1040 = vmatpush1.msra.mxu0 0.0
    %1041 = vmatprep.subr.mxu0 0.0
    %1042 = vmatpush1.msra.mxu0 0.0
    %1043 = vmatprep.subr.mxu0 0.0
    %1044 = vmatpush1.msra.mxu0 0.0
    %1045 = vmatprep.subr.mxu0 0.0
    %1046 = vmatpush1.msra.mxu0 0.0
    %1047 = vmatprep.subr.mxu0 0.0
    %1048 = vmatpush1.msra.mxu0 0.0
    %1049 = vmatprep.subr.mxu0 0.0
    %1050 = vmatpush1.msra.mxu0 0.0
    %1051 = vmatprep.subr.mxu0 %v946
    %1052 = vmatpush1.msra.mxu0 %v945
    %1053 = vmatprep.subr.mxu0 %v942
    %1054 = vmatpush1.msra.mxu0 %v941
    %1055 = vmatprep.subr.mxu0 0.0
    %1056 = vmatpush2.msra.mxu0 0.0
    %1057 = vmatprep.subr.mxu0 0.0
    %1058 = vmatpush2.msra.mxu0 0.0
    %1059 = vmatprep.subr.mxu0 0.0
    %1060 = vmatpush2.msra.mxu0 0.0
    %1061 = vmatprep.subr.mxu0 0.0
    %1062 = vmatpush2.msra.mxu0 0.0
    %1063 = vmatprep.subr.mxu0 0.0
    %1064 = vmatpush2.msra.mxu0 0.0
    %1065 = vmatprep.subr.mxu0 0.0
    %1066 = vmatpush2.msra.mxu0 0.0
    %1067 = vmatprep.subr.mxu0 0.0
    %1068 = vmatpush2.msra.mxu0 0.0
    %1069 = vmatprep.subr.mxu0 0.0
    %1070 = vmatpush2.msra.mxu0 0.0
    %1071 = vmatprep.subr.mxu0 0.0
    %1072 = vmatpush2.msra.mxu0 0.0
    %1073 = vmatprep.subr.mxu0 0.0
    %1074 = vmatpush2.msra.mxu0 0.0
    %1075 = vmatprep.subr.mxu0 0.0
    %1076 = vmatpush2.msra.mxu0 0.0
    %1077 = vmatprep.subr.mxu0 0.0
    %1078 = vmatpush2.msra.mxu0 0.0
    %1079 = vmatprep.subr.mxu0 0.0
    %1080 = vmatpush2.msra.mxu0 0.0
    %1081 = vmatprep.subr.mxu0 0.0
    %1082 = vmatpush2.msra.mxu0 0.0
    %1083 = vmatprep.subr.mxu0 0.0
    %1084 = vmatpush2.msra.mxu0 0.0
    %1085 = vmatprep.subr.mxu0 0.0
    %1086 = vmatpush2.msra.mxu0 0.0
    %1087 = vmatprep.mubr.f32.mxu0 0.0
    %1088 = vmatmul.mubr.f32.gmra.mxu0 %v950
    %v1089 = vpop.f32.mrf.mxu0
    %v1090 = vadd.f32 0.0, %v1089
    %v1091 = vpop.f32.mrf.mxu0
    %v1092 = vadd.f32 0.0, %v1091
    %1093 = vdwg.mxu0
    %v1094 = vadd.f32 %v816, %v1019
    %v1095 = vadd.f32 %v818, %v1021
    %v1096 = vadd.f32 %v887, %v1090
    %v1097 = vadd.f32 %v889, %v1092
    %1098 = vrot.lane.b32.xlu0 %v477, 1
    %v1099 = vpop.permute.xlu0 %1098
    %1100 = vrot.lane.b32.xlu0 %v481, 1
    %v1101 = vpop.permute.xlu0 %1100
    %1102 = vrot.lane.b32.xlu0 %v478, 1
    %v1103 = vpop.permute.xlu0 %1102
    %1104 = vrot.lane.b32.xlu0 %v482, 1
    %v1105 = vpop.permute.xlu0 %1104
    %1106 = vrot.lane.b32.xlu0 %v479, 1
    %v1107 = vpop.permute.xlu0 %1106
    %1108 = vrot.lane.b32.xlu0 %v483, 1
    %v1109 = vpop.permute.xlu0 %1108
    %1110 = vrot.lane.b32.xlu0 %v480, 1
    %v1111 = vpop.permute.xlu0 %1110
    %1112 = vrot.lane.b32.xlu0 %v484, 1
    %v1113 = vpop.permute.xlu0 %1112
    %vm1114 = vcmp.lt.s32.totalorder %v502, 1
    %v1115 = vsel %vm1114, %v1107, %v1111
    %v1116 = vsel %vm1114, %v1109, %v1113
    %v1117 = vsel %vm1114, %v1103, %v1107
    %v1118 = vsel %vm1114, %v1105, %v1109
    %v1119 = vsel %vm1114, %v1099, %v1103
    %v1120 = vsel %vm1114, %v1101, %v1105
    %v1121 = vsel %vm1114, %v1111, %v1099
    %v1122 = vsel %vm1114, %v1113, %v1101
    %s1123 = scalar_lea.vmem [#allocation5], 3
    %v1124 = vld [vmem:[%s1123] ss:$8 sm:$0xf]
    %v1126 = vlaneseq
    %v1127 = vshrl.u32 %v1126, 7
    %v1128 = vsub.s32 0, %v1127
    %v1129 = vrot.slane %v1124, %v1128
    %v1130 = vlaneseq
    %v1131 = vshrl.u32 %v1130, 7
    %v1132 = vsub.s32 1, %v1131
    %v1133 = vrot.slane %v1124, %v1132
    %v1134 = vlaneseq
    %v1135 = vshrl.u32 %v1134, 7
    %v1136 = vsub.s32 2, %v1135
    %v1137 = vrot.slane %v1124, %v1136
    %v1138 = vlaneseq
    %v1139 = vshrl.u32 %v1138, 7
    %v1140 = vsub.s32 3, %v1139
    %v1141 = vrot.slane %v1124, %v1140
    %v1146 = vmul.f32 %v1121, %v1129
    %v1147 = vmul.f32 %v1119, %v1133
    %v1148 = vmul.f32 %v1117, %v1137
    %v1149 = vmul.f32 %v1115, %v1141
    %v1150 = vmul.f32 %v1122, %v1129
    %v1151 = vmul.f32 %v1120, %v1133
    %v1152 = vmul.f32 %v1118, %v1137
    %v1153 = vmul.f32 %v1116, %v1141
    %s1154 = scalar_lea.vmem [#allocation7], 24
    %v1155 = vld [vmem:[%s1154] sm:$0xff]
    %v1157 = vsel %vm308, %v1155, 0
    %1159 = vmatprep.subr.mxu0 0.0
    %1160 = vmatpush1.msra.mxu0 0.0
    %1161 = vmatprep.subr.mxu0 0.0
    %1162 = vmatpush1.msra.mxu0 0.0
    %1163 = vmatprep.subr.mxu0 0.0
    %1164 = vmatpush1.msra.mxu0 0.0
    %1165 = vmatprep.subr.mxu0 0.0
    %1166 = vmatpush1.msra.mxu0 0.0
    %1167 = vmatprep.subr.mxu0 0.0
    %1168 = vmatpush1.msra.mxu0 0.0
    %1169 = vmatprep.subr.mxu0 0.0
    %1170 = vmatpush1.msra.mxu0 0.0
    %1171 = vmatprep.subr.mxu0 0.0
    %1172 = vmatpush1.msra.mxu0 0.0
    %1173 = vmatprep.subr.mxu0 0.0
    %1174 = vmatpush1.msra.mxu0 0.0
    %1175 = vmatprep.subr.mxu0 0.0
    %1176 = vmatpush1.msra.mxu0 0.0
    %1177 = vmatprep.subr.mxu0 0.0
    %1178 = vmatpush1.msra.mxu0 0.0
    %1179 = vmatprep.subr.mxu0 0.0
    %1180 = vmatpush1.msra.mxu0 0.0
    %1181 = vmatprep.subr.mxu0 0.0
    %1182 = vmatpush1.msra.mxu0 0.0
    %1183 = vmatprep.subr.mxu0 0.0
    %1184 = vmatpush1.msra.mxu0 0.0
    %1185 = vmatprep.subr.mxu0 0.0
    %1186 = vmatpush1.msra.mxu0 0.0
    %1187 = vmatprep.subr.mxu0 %v1151
    %1188 = vmatpush1.msra.mxu0 %v1150
    %1189 = vmatprep.subr.mxu0 %v1147
    %1190 = vmatpush1.msra.mxu0 %v1146
    %1191 = vmatprep.subr.mxu0 0.0
    %1192 = vmatpush2.msra.mxu0 0.0
    %1193 = vmatprep.subr.mxu0 0.0
    %1194 = vmatpush2.msra.mxu0 0.0
    %1195 = vmatprep.subr.mxu0 0.0
    %1196 = vmatpush2.msra.mxu0 0.0
    %1197 = vmatprep.subr.mxu0 0.0
    %1198 = vmatpush2.msra.mxu0 0.0
    %1199 = vmatprep.subr.mxu0 0.0
    %1200 = vmatpush2.msra.mxu0 0.0
    %1201 = vmatprep.subr.mxu0 0.0
    %1202 = vmatpush2.msra.mxu0 0.0
    %1203 = vmatprep.subr.mxu0 0.0
    %1204 = vmatpush2.msra.mxu0 0.0
    %1205 = vmatprep.subr.mxu0 0.0
    %1206 = vmatpush2.msra.mxu0 0.0
    %1207 = vmatprep.subr.mxu0 0.0
    %1208 = vmatpush2.msra.mxu0 0.0
    %1209 = vmatprep.subr.mxu0 0.0
    %1210 = vmatpush2.msra.mxu0 0.0
    %1211 = vmatprep.subr.mxu0 0.0
    %1212 = vmatpush2.msra.mxu0 0.0
    %1213 = vmatprep.subr.mxu0 0.0
    %1214 = vmatpush2.msra.mxu0 0.0
    %1215 = vmatprep.subr.mxu0 0.0
    %1216 = vmatpush2.msra.mxu0 0.0
    %1217 = vmatprep.subr.mxu0 0.0
    %1218 = vmatpush2.msra.mxu0 0.0
    %1219 = vmatprep.subr.mxu0 0.0
    %1220 = vmatpush2.msra.mxu0 0.0
    %1221 = vmatprep.subr.mxu0 0.0
    %1222 = vmatpush2.msra.mxu0 0.0
    %1223 = vmatprep.mubr.f32.mxu0 0.0
    %1224 = vmatmul.mubr.f32.gmra.mxu0 %v1157
    %v1225 = vpop.f32.mrf.mxu0
    %v1226 = vadd.f32 0.0, %v1225
    %v1227 = vpop.f32.mrf.mxu0
    %v1228 = vadd.f32 0.0, %v1227
    %1229 = vdwg.mxu0
    %1230 = vmatprep.subr.mxu0 0.0
    %1231 = vmatpush1.msra.mxu0 0.0
    %1232 = vmatprep.subr.mxu0 0.0
    %1233 = vmatpush1.msra.mxu0 0.0
    %1234 = vmatprep.subr.mxu0 0.0
    %1235 = vmatpush1.msra.mxu0 0.0
    %1236 = vmatprep.subr.mxu0 0.0
    %1237 = vmatpush1.msra.mxu0 0.0
    %1238 = vmatprep.subr.mxu0 0.0
    %1239 = vmatpush1.msra.mxu0 0.0
    %1240 = vmatprep.subr.mxu0 0.0
    %1241 = vmatpush1.msra.mxu0 0.0
    %1242 = vmatprep.subr.mxu0 0.0
    %1243 = vmatpush1.msra.mxu0 0.0
    %1244 = vmatprep.subr.mxu0 0.0
    %1245 = vmatpush1.msra.mxu0 0.0
    %1246 = vmatprep.subr.mxu0 0.0
    %1247 = vmatpush1.msra.mxu0 0.0
    %1248 = vmatprep.subr.mxu0 0.0
    %1249 = vmatpush1.msra.mxu0 0.0
    %1250 = vmatprep.subr.mxu0 0.0
    %1251 = vmatpush1.msra.mxu0 0.0
    %1252 = vmatprep.subr.mxu0 0.0
    %1253 = vmatpush1.msra.mxu0 0.0
    %1254 = vmatprep.subr.mxu0 0.0
    %1255 = vmatpush1.msra.mxu0 0.0
    %1256 = vmatprep.subr.mxu0 0.0
    %1257 = vmatpush1.msra.mxu0 0.0
    %1258 = vmatprep.subr.mxu0 %v1153
    %1259 = vmatpush1.msra.mxu0 %v1152
    %1260 = vmatprep.subr.mxu0 %v1149
    %1261 = vmatpush1.msra.mxu0 %v1148
    %1262 = vmatprep.subr.mxu0 0.0
    %1263 = vmatpush2.msra.mxu0 0.0
    %1264 = vmatprep.subr.mxu0 0.0
    %1265 = vmatpush2.msra.mxu0 0.0
    %1266 = vmatprep.subr.mxu0 0.0
    %1267 = vmatpush2.msra.mxu0 0.0
    %1268 = vmatprep.subr.mxu0 0.0
    %1269 = vmatpush2.msra.mxu0 0.0
    %1270 = vmatprep.subr.mxu0 0.0
    %1271 = vmatpush2.msra.mxu0 0.0
    %1272 = vmatprep.subr.mxu0 0.0
    %1273 = vmatpush2.msra.mxu0 0.0
    %1274 = vmatprep.subr.mxu0 0.0
    %1275 = vmatpush2.msra.mxu0 0.0
    %1276 = vmatprep.subr.mxu0 0.0
    %1277 = vmatpush2.msra.mxu0 0.0
    %1278 = vmatprep.subr.mxu0 0.0
    %1279 = vmatpush2.msra.mxu0 0.0
    %1280 = vmatprep.subr.mxu0 0.0
    %1281 = vmatpush2.msra.mxu0 0.0
    %1282 = vmatprep.subr.mxu0 0.0
    %1283 = vmatpush2.msra.mxu0 0.0
    %1284 = vmatprep.subr.mxu0 0.0
    %1285 = vmatpush2.msra.mxu0 0.0
    %1286 = vmatprep.subr.mxu0 0.0
    %1287 = vmatpush2.msra.mxu0 0.0
    %1288 = vmatprep.subr.mxu0 0.0
    %1289 = vmatpush2.msra.mxu0 0.0
    %1290 = vmatprep.subr.mxu0 0.0
    %1291 = vmatpush2.msra.mxu0 0.0
    %1292 = vmatprep.subr.mxu0 0.0
    %1293 = vmatpush2.msra.mxu0 0.0
    %1294 = vmatprep.mubr.f32.mxu0 0.0
    %1295 = vmatmul.mubr.f32.gmra.mxu0 %v1157
    %v1296 = vpop.f32.mrf.mxu0
    %v1297 = vadd.f32 0.0, %v1296
    %v1298 = vpop.f32.mrf.mxu0
    %v1299 = vadd.f32 0.0, %v1298
    %1300 = vdwg.mxu0
    %v1301 = vadd.f32 %v1094, %v1226
    %v1302 = vadd.f32 %v1095, %v1228
    %v1303 = vadd.f32 %v1096, %v1297
    %v1304 = vadd.f32 %v1097, %v1299
    %s1305 = scalar_lea.vmem [#allocation7], 32
    %v1306 = vld [vmem:[%s1305] sm:$0xff]
    %v1308 = vsel %vm308, %v1306, 0
    %1310 = vmatprep.subr.mxu0 0.0
    %1311 = vmatpush1.msra.mxu0 0.0
    %1312 = vmatprep.subr.mxu0 0.0
    %1313 = vmatpush1.msra.mxu0 0.0
    %1314 = vmatprep.subr.mxu0 0.0
    %1315 = vmatpush1.msra.mxu0 0.0
    %1316 = vmatprep.subr.mxu0 0.0
    %1317 = vmatpush1.msra.mxu0 0.0
    %1318 = vmatprep.subr.mxu0 0.0
    %1319 = vmatpush1.msra.mxu0 0.0
    %1320 = vmatprep.subr.mxu0 0.0
    %1321 = vmatpush1.msra.mxu0 0.0
    %1322 = vmatprep.subr.mxu0 0.0
    %1323 = vmatpush1.msra.mxu0 0.0
    %1324 = vmatprep.subr.mxu0 0.0
    %1325 = vmatpush1.msra.mxu0 0.0
    %1326 = vmatprep.subr.mxu0 0.0
    %1327 = vmatpush1.msra.mxu0 0.0
    %1328 = vmatprep.subr.mxu0 0.0
    %1329 = vmatpush1.msra.mxu0 0.0
    %1330 = vmatprep.subr.mxu0 0.0
    %1331 = vmatpush1.msra.mxu0 0.0
    %1332 = vmatprep.subr.mxu0 0.0
    %1333 = vmatpush1.msra.mxu0 0.0
    %1334 = vmatprep.subr.mxu0 0.0
    %1335 = vmatpush1.msra.mxu0 0.0
    %1336 = vmatprep.subr.mxu0 0.0
    %1337 = vmatpush1.msra.mxu0 0.0
    %1338 = vmatprep.subr.mxu0 %v482
    %1339 = vmatpush1.msra.mxu0 %v481
    %1340 = vmatprep.subr.mxu0 %v478
    %1341 = vmatpush1.msra.mxu0 %v477
    %1342 = vmatprep.subr.mxu0 0.0
    %1343 = vmatpush2.msra.mxu0 0.0
    %1344 = vmatprep.subr.mxu0 0.0
    %1345 = vmatpush2.msra.mxu0 0.0
    %1346 = vmatprep.subr.mxu0 0.0
    %1347 = vmatpush2.msra.mxu0 0.0
    %1348 = vmatprep.subr.mxu0 0.0
    %1349 = vmatpush2.msra.mxu0 0.0
    %1350 = vmatprep.subr.mxu0 0.0
    %1351 = vmatpush2.msra.mxu0 0.0
    %1352 = vmatprep.subr.mxu0 0.0
    %1353 = vmatpush2.msra.mxu0 0.0
    %1354 = vmatprep.subr.mxu0 0.0
    %1355 = vmatpush2.msra.mxu0 0.0
    %1356 = vmatprep.subr.mxu0 0.0
    %1357 = vmatpush2.msra.mxu0 0.0
    %1358 = vmatprep.subr.mxu0 0.0
    %1359 = vmatpush2.msra.mxu0 0.0
    %1360 = vmatprep.subr.mxu0 0.0
    %1361 = vmatpush2.msra.mxu0 0.0
    %1362 = vmatprep.subr.mxu0 0.0
    %1363 = vmatpush2.msra.mxu0 0.0
    %1364 = vmatprep.subr.mxu0 0.0
    %1365 = vmatpush2.msra.mxu0 0.0
    %1366 = vmatprep.subr.mxu0 0.0
    %1367 = vmatpush2.msra.mxu0 0.0
    %1368 = vmatprep.subr.mxu0 0.0
    %1369 = vmatpush2.msra.mxu0 0.0
    %1370 = vmatprep.subr.mxu0 0.0
    %1371 = vmatpush2.msra.mxu0 0.0
    %1372 = vmatprep.subr.mxu0 0.0
    %1373 = vmatpush2.msra.mxu0 0.0
    %1374 = vmatprep.mubr.f32.mxu0 0.0
    %1375 = vmatmul.mubr.f32.gmra.mxu0 %v1308
    %v1376 = vpop.f32.mrf.mxu0
    %v1377 = vadd.f32 0.0, %v1376
    %v1378 = vpop.f32.mrf.mxu0
    %v1379 = vadd.f32 0.0, %v1378
    %1380 = vdwg.mxu0
    %1381 = vmatprep.subr.mxu0 0.0
    %1382 = vmatpush1.msra.mxu0 0.0
    %1383 = vmatprep.subr.mxu0 0.0
    %1384 = vmatpush1.msra.mxu0 0.0
    %1385 = vmatprep.subr.mxu0 0.0
    %1386 = vmatpush1.msra.mxu0 0.0
    %1387 = vmatprep.subr.mxu0 0.0
    %1388 = vmatpush1.msra.mxu0 0.0
    %1389 = vmatprep.subr.mxu0 0.0
    %1390 = vmatpush1.msra.mxu0 0.0
    %1391 = vmatprep.subr.mxu0 0.0
    %1392 = vmatpush1.msra.mxu0 0.0
    %1393 = vmatprep.subr.mxu0 0.0
    %1394 = vmatpush1.msra.mxu0 0.0
    %1395 = vmatprep.subr.mxu0 0.0
    %1396 = vmatpush1.msra.mxu0 0.0
    %1397 = vmatprep.subr.mxu0 0.0
    %1398 = vmatpush1.msra.mxu0 0.0
    %1399 = vmatprep.subr.mxu0 0.0
    %1400 = vmatpush1.msra.mxu0 0.0
    %1401 = vmatprep.subr.mxu0 0.0
    %1402 = vmatpush1.msra.mxu0 0.0
    %1403 = vmatprep.subr.mxu0 0.0
    %1404 = vmatpush1.msra.mxu0 0.0
    %1405 = vmatprep.subr.mxu0 0.0
    %1406 = vmatpush1.msra.mxu0 0.0
    %1407 = vmatprep.subr.mxu0 0.0
    %1408 = vmatpush1.msra.mxu0 0.0
    %1409 = vmatprep.subr.mxu0 %v484
    %1410 = vmatpush1.msra.mxu0 %v483
    %1411 = vmatprep.subr.mxu0 %v480
    %1412 = vmatpush1.msra.mxu0 %v479
    %1413 = vmatprep.subr.mxu0 0.0
    %1414 = vmatpush2.msra.mxu0 0.0
    %1415 = vmatprep.subr.mxu0 0.0
    %1416 = vmatpush2.msra.mxu0 0.0
    %1417 = vmatprep.subr.mxu0 0.0
    %1418 = vmatpush2.msra.mxu0 0.0
    %1419 = vmatprep.subr.mxu0 0.0
    %1420 = vmatpush2.msra.mxu0 0.0
    %1421 = vmatprep.subr.mxu0 0.0
    %1422 = vmatpush2.msra.mxu0 0.0
    %1423 = vmatprep.subr.mxu0 0.0
    %1424 = vmatpush2.msra.mxu0 0.0
    %1425 = vmatprep.subr.mxu0 0.0
    %1426 = vmatpush2.msra.mxu0 0.0
    %1427 = vmatprep.subr.mxu0 0.0
    %1428 = vmatpush2.msra.mxu0 0.0
    %1429 = vmatprep.subr.mxu0 0.0
    %1430 = vmatpush2.msra.mxu0 0.0
    %1431 = vmatprep.subr.mxu0 0.0
    %1432 = vmatpush2.msra.mxu0 0.0
    %1433 = vmatprep.subr.mxu0 0.0
    %1434 = vmatpush2.msra.mxu0 0.0
    %1435 = vmatprep.subr.mxu0 0.0
    %1436 = vmatpush2.msra.mxu0 0.0
    %1437 = vmatprep.subr.mxu0 0.0
    %1438 = vmatpush2.msra.mxu0 0.0
    %1439 = vmatprep.subr.mxu0 0.0
    %1440 = vmatpush2.msra.mxu0 0.0
    %1441 = vmatprep.subr.mxu0 0.0
    %1442 = vmatpush2.msra.mxu0 0.0
    %1443 = vmatprep.subr.mxu0 0.0
    %1444 = vmatpush2.msra.mxu0 0.0
    %1445 = vmatprep.mubr.f32.mxu0 0.0
    %1446 = vmatmul.mubr.f32.gmra.mxu0 %v1308
    %v1447 = vpop.f32.mrf.mxu0
    %v1448 = vadd.f32 0.0, %v1447
    %v1449 = vpop.f32.mrf.mxu0
    %v1450 = vadd.f32 0.0, %v1449
    %1451 = vdwg.mxu0
    %v1452 = vadd.f32 %v1301, %v1377
    %v1453 = vadd.f32 %v1302, %v1379
    %v1454 = vadd.f32 %v1303, %v1448
    %v1455 = vadd.f32 %v1304, %v1450
    %1456 = vrot.lane.b32.xlu0 %v477, 127
    %v1457 = vpop.permute.xlu0 %1456
    %1458 = vrot.lane.b32.xlu0 %v481, 127
    %v1459 = vpop.permute.xlu0 %1458
    %1460 = vrot.lane.b32.xlu0 %v478, 127
    %v1461 = vpop.permute.xlu0 %1460
    %1462 = vrot.lane.b32.xlu0 %v482, 127
    %v1463 = vpop.permute.xlu0 %1462
    %1464 = vrot.lane.b32.xlu0 %v479, 127
    %v1465 = vpop.permute.xlu0 %1464
    %1466 = vrot.lane.b32.xlu0 %v483, 127
    %v1467 = vpop.permute.xlu0 %1466
    %1468 = vrot.lane.b32.xlu0 %v480, 127
    %v1469 = vpop.permute.xlu0 %1468
    %1470 = vrot.lane.b32.xlu0 %v484, 127
    %v1471 = vpop.permute.xlu0 %1470
    %vm1472 = vcmp.lt.s32.totalorder %v502, 127
    %v1473 = vsel %vm1472, %v1465, %v1469
    %v1474 = vsel %vm1472, %v1467, %v1471
    %v1475 = vsel %vm1472, %v1461, %v1465
    %v1476 = vsel %vm1472, %v1463, %v1467
    %v1477 = vsel %vm1472, %v1457, %v1461
    %v1478 = vsel %vm1472, %v1459, %v1463
    %v1479 = vsel %vm1472, %v1469, %v1457
    %v1480 = vsel %vm1472, %v1471, %v1459
    %s1481 = scalar_lea.vmem [#allocation5], 5
    %v1482 = vld [vmem:[%s1481] ss:$8 sm:$0xf]
    %v1484 = vlaneseq
    %v1485 = vshrl.u32 %v1484, 7
    %v1486 = vsub.s32 0, %v1485
    %v1487 = vrot.slane %v1482, %v1486
    %v1488 = vlaneseq
    %v1489 = vshrl.u32 %v1488, 7
    %v1490 = vsub.s32 1, %v1489
    %v1491 = vrot.slane %v1482, %v1490
    %v1492 = vlaneseq
    %v1493 = vshrl.u32 %v1492, 7
    %v1494 = vsub.s32 2, %v1493
    %v1495 = vrot.slane %v1482, %v1494
    %v1496 = vlaneseq
    %v1497 = vshrl.u32 %v1496, 7
    %v1498 = vsub.s32 3, %v1497
    %v1499 = vrot.slane %v1482, %v1498
    %v1504 = vmul.f32 %v1477, %v1487
    %v1505 = vmul.f32 %v1475, %v1491
    %v1506 = vmul.f32 %v1473, %v1495
    %v1507 = vmul.f32 %v1479, %v1499
    %v1508 = vmul.f32 %v1478, %v1487
    %v1509 = vmul.f32 %v1476, %v1491
    %v1510 = vmul.f32 %v1474, %v1495
    %v1511 = vmul.f32 %v1480, %v1499
    %s1512 = scalar_lea.vmem [#allocation7], 40
    %v1513 = vld [vmem:[%s1512] sm:$0xff]
    %v1515 = vsel %vm308, %v1513, 0
    %1517 = vmatprep.subr.mxu0 0.0
    %1518 = vmatpush1.msra.mxu0 0.0
    %1519 = vmatprep.subr.mxu0 0.0
    %1520 = vmatpush1.msra.mxu0 0.0
    %1521 = vmatprep.subr.mxu0 0.0
    %1522 = vmatpush1.msra.mxu0 0.0
    %1523 = vmatprep.subr.mxu0 0.0
    %1524 = vmatpush1.msra.mxu0 0.0
    %1525 = vmatprep.subr.mxu0 0.0
    %1526 = vmatpush1.msra.mxu0 0.0
    %1527 = vmatprep.subr.mxu0 0.0
    %1528 = vmatpush1.msra.mxu0 0.0
    %1529 = vmatprep.subr.mxu0 0.0
    %1530 = vmatpush1.msra.mxu0 0.0
    %1531 = vmatprep.subr.mxu0 0.0
    %1532 = vmatpush1.msra.mxu0 0.0
    %1533 = vmatprep.subr.mxu0 0.0
    %1534 = vmatpush1.msra.mxu0 0.0
    %1535 = vmatprep.subr.mxu0 0.0
    %1536 = vmatpush1.msra.mxu0 0.0
    %1537 = vmatprep.subr.mxu0 0.0
    %1538 = vmatpush1.msra.mxu0 0.0
    %1539 = vmatprep.subr.mxu0 0.0
    %1540 = vmatpush1.msra.mxu0 0.0
    %1541 = vmatprep.subr.mxu0 0.0
    %1542 = vmatpush1.msra.mxu0 0.0
    %1543 = vmatprep.subr.mxu0 0.0
    %1544 = vmatpush1.msra.mxu0 0.0
    %1545 = vmatprep.subr.mxu0 %v1509
    %1546 = vmatpush1.msra.mxu0 %v1508
    %1547 = vmatprep.subr.mxu0 %v1505
    %1548 = vmatpush1.msra.mxu0 %v1504
    %1549 = vmatprep.subr.mxu0 0.0
    %1550 = vmatpush2.msra.mxu0 0.0
    %1551 = vmatprep.subr.mxu0 0.0
    %1552 = vmatpush2.msra.mxu0 0.0
    %1553 = vmatprep.subr.mxu0 0.0
    %1554 = vmatpush2.msra.mxu0 0.0
    %1555 = vmatprep.subr.mxu0 0.0
    %1556 = vmatpush2.msra.mxu0 0.0
    %1557 = vmatprep.subr.mxu0 0.0
    %1558 = vmatpush2.msra.mxu0 0.0
    %1559 = vmatprep.subr.mxu0 0.0
    %1560 = vmatpush2.msra.mxu0 0.0
    %1561 = vmatprep.subr.mxu0 0.0
    %1562 = vmatpush2.msra.mxu0 0.0
    %1563 = vmatprep.subr.mxu0 0.0
    %1564 = vmatpush2.msra.mxu0 0.0
    %1565 = vmatprep.subr.mxu0 0.0
    %1566 = vmatpush2.msra.mxu0 0.0
    %1567 = vmatprep.subr.mxu0 0.0
    %1568 = vmatpush2.msra.mxu0 0.0
    %1569 = vmatprep.subr.mxu0 0.0
    %1570 = vmatpush2.msra.mxu0 0.0
    %1571 = vmatprep.subr.mxu0 0.0
    %1572 = vmatpush2.msra.mxu0 0.0
    %1573 = vmatprep.subr.mxu0 0.0
    %1574 = vmatpush2.msra.mxu0 0.0
    %1575 = vmatprep.subr.mxu0 0.0
    %1576 = vmatpush2.msra.mxu0 0.0
    %1577 = vmatprep.subr.mxu0 0.0
    %1578 = vmatpush2.msra.mxu0 0.0
    %1579 = vmatprep.subr.mxu0 0.0
    %1580 = vmatpush2.msra.mxu0 0.0
    %1581 = vmatprep.mubr.f32.mxu0 0.0
    %1582 = vmatmul.mubr.f32.gmra.mxu0 %v1515
    %v1583 = vpop.f32.mrf.mxu0
    %v1584 = vadd.f32 0.0, %v1583
    %v1585 = vpop.f32.mrf.mxu0
    %v1586 = vadd.f32 0.0, %v1585
    %1587 = vdwg.mxu0
    %1588 = vmatprep.subr.mxu0 0.0
    %1589 = vmatpush1.msra.mxu0 0.0
    %1590 = vmatprep.subr.mxu0 0.0
    %1591 = vmatpush1.msra.mxu0 0.0
    %1592 = vmatprep.subr.mxu0 0.0
    %1593 = vmatpush1.msra.mxu0 0.0
    %1594 = vmatprep.subr.mxu0 0.0
    %1595 = vmatpush1.msra.mxu0 0.0
    %1596 = vmatprep.subr.mxu0 0.0
    %1597 = vmatpush1.msra.mxu0 0.0
    %1598 = vmatprep.subr.mxu0 0.0
    %1599 = vmatpush1.msra.mxu0 0.0
    %1600 = vmatprep.subr.mxu0 0.0
    %1601 = vmatpush1.msra.mxu0 0.0
    %1602 = vmatprep.subr.mxu0 0.0
    %1603 = vmatpush1.msra.mxu0 0.0
    %1604 = vmatprep.subr.mxu0 0.0
    %1605 = vmatpush1.msra.mxu0 0.0
    %1606 = vmatprep.subr.mxu0 0.0
    %1607 = vmatpush1.msra.mxu0 0.0
    %1608 = vmatprep.subr.mxu0 0.0
    %1609 = vmatpush1.msra.mxu0 0.0
    %1610 = vmatprep.subr.mxu0 0.0
    %1611 = vmatpush1.msra.mxu0 0.0
    %1612 = vmatprep.subr.mxu0 0.0
    %1613 = vmatpush1.msra.mxu0 0.0
    %1614 = vmatprep.subr.mxu0 0.0
    %1615 = vmatpush1.msra.mxu0 0.0
    %1616 = vmatprep.subr.mxu0 %v1511
    %1617 = vmatpush1.msra.mxu0 %v1510
    %1618 = vmatprep.subr.mxu0 %v1507
    %1619 = vmatpush1.msra.mxu0 %v1506
    %1620 = vmatprep.subr.mxu0 0.0
    %1621 = vmatpush2.msra.mxu0 0.0
    %1622 = vmatprep.subr.mxu0 0.0
    %1623 = vmatpush2.msra.mxu0 0.0
    %1624 = vmatprep.subr.mxu0 0.0
    %1625 = vmatpush2.msra.mxu0 0.0
    %1626 = vmatprep.subr.mxu0 0.0
    %1627 = vmatpush2.msra.mxu0 0.0
    %1628 = vmatprep.subr.mxu0 0.0
    %1629 = vmatpush2.msra.mxu0 0.0
    %1630 = vmatprep.subr.mxu0 0.0
    %1631 = vmatpush2.msra.mxu0 0.0
    %1632 = vmatprep.subr.mxu0 0.0
    %1633 = vmatpush2.msra.mxu0 0.0
    %1634 = vmatprep.subr.mxu0 0.0
    %1635 = vmatpush2.msra.mxu0 0.0
    %1636 = vmatprep.subr.mxu0 0.0
    %1637 = vmatpush2.msra.mxu0 0.0
    %1638 = vmatprep.subr.mxu0 0.0
    %1639 = vmatpush2.msra.mxu0 0.0
    %1640 = vmatprep.subr.mxu0 0.0
    %1641 = vmatpush2.msra.mxu0 0.0
    %1642 = vmatprep.subr.mxu0 0.0
    %1643 = vmatpush2.msra.mxu0 0.0
    %1644 = vmatprep.subr.mxu0 0.0
    %1645 = vmatpush2.msra.mxu0 0.0
    %1646 = vmatprep.subr.mxu0 0.0
    %1647 = vmatpush2.msra.mxu0 0.0
    %1648 = vmatprep.subr.mxu0 0.0
    %1649 = vmatpush2.msra.mxu0 0.0
    %1650 = vmatprep.subr.mxu0 0.0
    %1651 = vmatpush2.msra.mxu0 0.0
    %1652 = vmatprep.mubr.f32.mxu0 0.0
    %1653 = vmatmul.mubr.f32.gmra.mxu0 %v1515
    %v1654 = vpop.f32.mrf.mxu0
    %v1655 = vadd.f32 0.0, %v1654
    %v1656 = vpop.f32.mrf.mxu0
    %v1657 = vadd.f32 0.0, %v1656
    %1658 = vdwg.mxu0
    %v1659 = vadd.f32 %v1452, %v1584
    %v1660 = vadd.f32 %v1453, %v1586
    %v1661 = vadd.f32 %v1454, %v1655
    %v1662 = vadd.f32 %v1455, %v1657
    %1663 = vrot.lane.b32.xlu0 %v477, 113
    %v1664 = vpop.permute.xlu0 %1663
    %1665 = vrot.lane.b32.xlu0 %v481, 113
    %v1666 = vpop.permute.xlu0 %1665
    %1667 = vrot.lane.b32.xlu0 %v478, 113
    %v1668 = vpop.permute.xlu0 %1667
    %1669 = vrot.lane.b32.xlu0 %v482, 113
    %v1670 = vpop.permute.xlu0 %1669
    %1671 = vrot.lane.b32.xlu0 %v479, 113
    %v1672 = vpop.permute.xlu0 %1671
    %1673 = vrot.lane.b32.xlu0 %v483, 113
    %v1674 = vpop.permute.xlu0 %1673
    %1675 = vrot.lane.b32.xlu0 %v480, 113
    %v1676 = vpop.permute.xlu0 %1675
    %1677 = vrot.lane.b32.xlu0 %v484, 113
    %v1678 = vpop.permute.xlu0 %1677
    %vm1679 = vcmp.lt.s32.totalorder %v502, 113
    %v1680 = vsel %vm1679, %v1672, %v1676
    %v1681 = vsel %vm1679, %v1674, %v1678
    %v1682 = vsel %vm1679, %v1668, %v1672
    %v1683 = vsel %vm1679, %v1670, %v1674
    %v1684 = vsel %vm1679, %v1664, %v1668
    %v1685 = vsel %vm1679, %v1666, %v1670
    %v1686 = vsel %vm1679, %v1676, %v1664
    %v1687 = vsel %vm1679, %v1678, %v1666
    %s1688 = scalar_lea.vmem [#allocation5], 6
    %v1689 = vld [vmem:[%s1688] ss:$8 sm:$0xf]
    %v1691 = vlaneseq
    %v1692 = vshrl.u32 %v1691, 7
    %v1693 = vsub.s32 0, %v1692
    %v1694 = vrot.slane %v1689, %v1693
    %v1695 = vlaneseq
    %v1696 = vshrl.u32 %v1695, 7
    %v1697 = vsub.s32 1, %v1696
    %v1698 = vrot.slane %v1689, %v1697
    %v1699 = vlaneseq
    %v1700 = vshrl.u32 %v1699, 7
    %v1701 = vsub.s32 2, %v1700
    %v1702 = vrot.slane %v1689, %v1701
    %v1703 = vlaneseq
    %v1704 = vshrl.u32 %v1703, 7
    %v1705 = vsub.s32 3, %v1704
    %v1706 = vrot.slane %v1689, %v1705
    %v1711 = vmul.f32 %v1684, %v1694
    %v1712 = vmul.f32 %v1682, %v1698
    %v1713 = vmul.f32 %v1680, %v1702
    %v1714 = vmul.f32 %v1686, %v1706
    %v1715 = vmul.f32 %v1685, %v1694
    %v1716 = vmul.f32 %v1683, %v1698
    %v1717 = vmul.f32 %v1681, %v1702
    %v1718 = vmul.f32 %v1687, %v1706
    %s1719 = scalar_lea.vmem [#allocation7], 48
    %v1720 = vld [vmem:[%s1719] sm:$0xff]
    %v1722 = vsel %vm308, %v1720, 0
    %1724 = vmatprep.subr.mxu0 0.0
    %1725 = vmatpush1.msra.mxu0 0.0
    %1726 = vmatprep.subr.mxu0 0.0
    %1727 = vmatpush1.msra.mxu0 0.0
    %1728 = vmatprep.subr.mxu0 0.0
    %1729 = vmatpush1.msra.mxu0 0.0
    %1730 = vmatprep.subr.mxu0 0.0
    %1731 = vmatpush1.msra.mxu0 0.0
    %1732 = vmatprep.subr.mxu0 0.0
    %1733 = vmatpush1.msra.mxu0 0.0
    %1734 = vmatprep.subr.mxu0 0.0
    %1735 = vmatpush1.msra.mxu0 0.0
    %1736 = vmatprep.subr.mxu0 0.0
    %1737 = vmatpush1.msra.mxu0 0.0
    %1738 = vmatprep.subr.mxu0 0.0
    %1739 = vmatpush1.msra.mxu0 0.0
    %1740 = vmatprep.subr.mxu0 0.0
    %1741 = vmatpush1.msra.mxu0 0.0
    %1742 = vmatprep.subr.mxu0 0.0
    %1743 = vmatpush1.msra.mxu0 0.0
    %1744 = vmatprep.subr.mxu0 0.0
    %1745 = vmatpush1.msra.mxu0 0.0
    %1746 = vmatprep.subr.mxu0 0.0
    %1747 = vmatpush1.msra.mxu0 0.0
    %1748 = vmatprep.subr.mxu0 0.0
    %1749 = vmatpush1.msra.mxu0 0.0
    %1750 = vmatprep.subr.mxu0 0.0
    %1751 = vmatpush1.msra.mxu0 0.0
    %1752 = vmatprep.subr.mxu0 %v1716
    %1753 = vmatpush1.msra.mxu0 %v1715
    %1754 = vmatprep.subr.mxu0 %v1712
    %1755 = vmatpush1.msra.mxu0 %v1711
    %1756 = vmatprep.subr.mxu0 0.0
    %1757 = vmatpush2.msra.mxu0 0.0
    %1758 = vmatprep.subr.mxu0 0.0
    %1759 = vmatpush2.msra.mxu0 0.0
    %1760 = vmatprep.subr.mxu0 0.0
    %1761 = vmatpush2.msra.mxu0 0.0
    %1762 = vmatprep.subr.mxu0 0.0
    %1763 = vmatpush2.msra.mxu0 0.0
    %1764 = vmatprep.subr.mxu0 0.0
    %1765 = vmatpush2.msra.mxu0 0.0
    %1766 = vmatprep.subr.mxu0 0.0
    %1767 = vmatpush2.msra.mxu0 0.0
    %1768 = vmatprep.subr.mxu0 0.0
    %1769 = vmatpush2.msra.mxu0 0.0
    %1770 = vmatprep.subr.mxu0 0.0
    %1771 = vmatpush2.msra.mxu0 0.0
    %1772 = vmatprep.subr.mxu0 0.0
    %1773 = vmatpush2.msra.mxu0 0.0
    %1774 = vmatprep.subr.mxu0 0.0
    %1775 = vmatpush2.msra.mxu0 0.0
    %1776 = vmatprep.subr.mxu0 0.0
    %1777 = vmatpush2.msra.mxu0 0.0
    %1778 = vmatprep.subr.mxu0 0.0
    %1779 = vmatpush2.msra.mxu0 0.0
    %1780 = vmatprep.subr.mxu0 0.0
    %1781 = vmatpush2.msra.mxu0 0.0
    %1782 = vmatprep.subr.mxu0 0.0
    %1783 = vmatpush2.msra.mxu0 0.0
    %1784 = vmatprep.subr.mxu0 0.0
    %1785 = vmatpush2.msra.mxu0 0.0
    %1786 = vmatprep.subr.mxu0 0.0
    %1787 = vmatpush2.msra.mxu0 0.0
    %1788 = vmatprep.mubr.f32.mxu0 0.0
    %1789 = vmatmul.mubr.f32.gmra.mxu0 %v1722
    %v1790 = vpop.f32.mrf.mxu0
    %v1791 = vadd.f32 0.0, %v1790
    %v1792 = vpop.f32.mrf.mxu0
    %v1793 = vadd.f32 0.0, %v1792
    %1794 = vdwg.mxu0
    %1795 = vmatprep.subr.mxu0 0.0
    %1796 = vmatpush1.msra.mxu0 0.0
    %1797 = vmatprep.subr.mxu0 0.0
    %1798 = vmatpush1.msra.mxu0 0.0
    %1799 = vmatprep.subr.mxu0 0.0
    %1800 = vmatpush1.msra.mxu0 0.0
    %1801 = vmatprep.subr.mxu0 0.0
    %1802 = vmatpush1.msra.mxu0 0.0
    %1803 = vmatprep.subr.mxu0 0.0
    %1804 = vmatpush1.msra.mxu0 0.0
    %1805 = vmatprep.subr.mxu0 0.0
    %1806 = vmatpush1.msra.mxu0 0.0
    %1807 = vmatprep.subr.mxu0 0.0
    %1808 = vmatpush1.msra.mxu0 0.0
    %1809 = vmatprep.subr.mxu0 0.0
    %1810 = vmatpush1.msra.mxu0 0.0
    %1811 = vmatprep.subr.mxu0 0.0
    %1812 = vmatpush1.msra.mxu0 0.0
    %1813 = vmatprep.subr.mxu0 0.0
    %1814 = vmatpush1.msra.mxu0 0.0
    %1815 = vmatprep.subr.mxu0 0.0
    %1816 = vmatpush1.msra.mxu0 0.0
    %1817 = vmatprep.subr.mxu0 0.0
    %1818 = vmatpush1.msra.mxu0 0.0
    %1819 = vmatprep.subr.mxu0 0.0
    %1820 = vmatpush1.msra.mxu0 0.0
    %1821 = vmatprep.subr.mxu0 0.0
    %1822 = vmatpush1.msra.mxu0 0.0
    %1823 = vmatprep.subr.mxu0 %v1718
    %1824 = vmatpush1.msra.mxu0 %v1717
    %1825 = vmatprep.subr.mxu0 %v1714
    %1826 = vmatpush1.msra.mxu0 %v1713
    %1827 = vmatprep.subr.mxu0 0.0
    %1828 = vmatpush2.msra.mxu0 0.0
    %1829 = vmatprep.subr.mxu0 0.0
    %1830 = vmatpush2.msra.mxu0 0.0
    %1831 = vmatprep.subr.mxu0 0.0
    %1832 = vmatpush2.msra.mxu0 0.0
    %1833 = vmatprep.subr.mxu0 0.0
    %1834 = vmatpush2.msra.mxu0 0.0
    %1835 = vmatprep.subr.mxu0 0.0
    %1836 = vmatpush2.msra.mxu0 0.0
    %1837 = vmatprep.subr.mxu0 0.0
    %1838 = vmatpush2.msra.mxu0 0.0
    %1839 = vmatprep.subr.mxu0 0.0
    %1840 = vmatpush2.msra.mxu0 0.0
    %1841 = vmatprep.subr.mxu0 0.0
    %1842 = vmatpush2.msra.mxu0 0.0
    %1843 = vmatprep.subr.mxu0 0.0
    %1844 = vmatpush2.msra.mxu0 0.0
    %1845 = vmatprep.subr.mxu0 0.0
    %1846 = vmatpush2.msra.mxu0 0.0
    %1847 = vmatprep.subr.mxu0 0.0
    %1848 = vmatpush2.msra.mxu0 0.0
    %1849 = vmatprep.subr.mxu0 0.0
    %1850 = vmatpush2.msra.mxu0 0.0
    %1851 = vmatprep.subr.mxu0 0.0
    %1852 = vmatpush2.msra.mxu0 0.0
    %1853 = vmatprep.subr.mxu0 0.0
    %1854 = vmatpush2.msra.mxu0 0.0
    %1855 = vmatprep.subr.mxu0 0.0
    %1856 = vmatpush2.msra.mxu0 0.0
    %1857 = vmatprep.subr.mxu0 0.0
    %1858 = vmatpush2.msra.mxu0 0.0
    %1859 = vmatprep.mubr.f32.mxu0 0.0
    %1860 = vmatmul.mubr.f32.gmra.mxu0 %v1722
    %v1861 = vpop.f32.mrf.mxu0
    %v1862 = vadd.f32 0.0, %v1861
    %v1863 = vpop.f32.mrf.mxu0
    %v1864 = vadd.f32 0.0, %v1863
    %1865 = vdwg.mxu0
    %v1866 = vadd.f32 %v1659, %v1791
    %v1867 = vadd.f32 %v1660, %v1793
    %v1868 = vadd.f32 %v1661, %v1862
    %v1869 = vadd.f32 %v1662, %v1864
    %1870 = vrot.lane.b32.xlu0 %v477, 112
    %v1871 = vpop.permute.xlu0 %1870
    %1872 = vrot.lane.b32.xlu0 %v481, 112
    %v1873 = vpop.permute.xlu0 %1872
    %1874 = vrot.lane.b32.xlu0 %v478, 112
    %v1875 = vpop.permute.xlu0 %1874
    %1876 = vrot.lane.b32.xlu0 %v482, 112
    %v1877 = vpop.permute.xlu0 %1876
    %1878 = vrot.lane.b32.xlu0 %v479, 112
    %v1879 = vpop.permute.xlu0 %1878
    %1880 = vrot.lane.b32.xlu0 %v483, 112
    %v1881 = vpop.permute.xlu0 %1880
    %1882 = vrot.lane.b32.xlu0 %v480, 112
    %v1883 = vpop.permute.xlu0 %1882
    %1884 = vrot.lane.b32.xlu0 %v484, 112
    %v1885 = vpop.permute.xlu0 %1884
    %vm1886 = vcmp.lt.s32.totalorder %v502, 112
    %v1887 = vsel %vm1886, %v1879, %v1883
    %v1888 = vsel %vm1886, %v1881, %v1885
    %v1889 = vsel %vm1886, %v1875, %v1879
    %v1890 = vsel %vm1886, %v1877, %v1881
    %v1891 = vsel %vm1886, %v1871, %v1875
    %v1892 = vsel %vm1886, %v1873, %v1877
    %v1893 = vsel %vm1886, %v1883, %v1871
    %v1894 = vsel %vm1886, %v1885, %v1873
    %s1895 = scalar_lea.vmem [#allocation5], 7
    %v1896 = vld [vmem:[%s1895] ss:$8 sm:$0xf]
    %v1898 = vlaneseq
    %v1899 = vshrl.u32 %v1898, 7
    %v1900 = vsub.s32 0, %v1899
    %v1901 = vrot.slane %v1896, %v1900
    %v1902 = vlaneseq
    %v1903 = vshrl.u32 %v1902, 7
    %v1904 = vsub.s32 1, %v1903
    %v1905 = vrot.slane %v1896, %v1904
    %v1906 = vlaneseq
    %v1907 = vshrl.u32 %v1906, 7
    %v1908 = vsub.s32 2, %v1907
    %v1909 = vrot.slane %v1896, %v1908
    %v1910 = vlaneseq
    %v1911 = vshrl.u32 %v1910, 7
    %v1912 = vsub.s32 3, %v1911
    %v1913 = vrot.slane %v1896, %v1912
    %v1918 = vmul.f32 %v1891, %v1901
    %v1919 = vmul.f32 %v1889, %v1905
    %v1920 = vmul.f32 %v1887, %v1909
    %v1921 = vmul.f32 %v1893, %v1913
    %v1922 = vmul.f32 %v1892, %v1901
    %v1923 = vmul.f32 %v1890, %v1905
    %v1924 = vmul.f32 %v1888, %v1909
    %v1925 = vmul.f32 %v1894, %v1913
    %s1926 = scalar_lea.vmem [#allocation7], 56
    %v1927 = vld [vmem:[%s1926] sm:$0xff]
    %v1929 = vsel %vm308, %v1927, 0
    %1931 = vmatprep.subr.mxu0 0.0
    %1932 = vmatpush1.msra.mxu0 0.0
    %1933 = vmatprep.subr.mxu0 0.0
    %1934 = vmatpush1.msra.mxu0 0.0
    %1935 = vmatprep.subr.mxu0 0.0
    %1936 = vmatpush1.msra.mxu0 0.0
    %1937 = vmatprep.subr.mxu0 0.0
    %1938 = vmatpush1.msra.mxu0 0.0
    %1939 = vmatprep.subr.mxu0 0.0
    %1940 = vmatpush1.msra.mxu0 0.0
    %1941 = vmatprep.subr.mxu0 0.0
    %1942 = vmatpush1.msra.mxu0 0.0
    %1943 = vmatprep.subr.mxu0 0.0
    %1944 = vmatpush1.msra.mxu0 0.0
    %1945 = vmatprep.subr.mxu0 0.0
    %1946 = vmatpush1.msra.mxu0 0.0
    %1947 = vmatprep.subr.mxu0 0.0
    %1948 = vmatpush1.msra.mxu0 0.0
    %1949 = vmatprep.subr.mxu0 0.0
    %1950 = vmatpush1.msra.mxu0 0.0
    %1951 = vmatprep.subr.mxu0 0.0
    %1952 = vmatpush1.msra.mxu0 0.0
    %1953 = vmatprep.subr.mxu0 0.0
    %1954 = vmatpush1.msra.mxu0 0.0
    %1955 = vmatprep.subr.mxu0 0.0
    %1956 = vmatpush1.msra.mxu0 0.0
    %1957 = vmatprep.subr.mxu0 0.0
    %1958 = vmatpush1.msra.mxu0 0.0
    %1959 = vmatprep.subr.mxu0 %v1923
    %1960 = vmatpush1.msra.mxu0 %v1922
    %1961 = vmatprep.subr.mxu0 %v1919
    %1962 = vmatpush1.msra.mxu0 %v1918
    %1963 = vmatprep.subr.mxu0 0.0
    %1964 = vmatpush2.msra.mxu0 0.0
    %1965 = vmatprep.subr.mxu0 0.0
    %1966 = vmatpush2.msra.mxu0 0.0
    %1967 = vmatprep.subr.mxu0 0.0
    %1968 = vmatpush2.msra.mxu0 0.0
    %1969 = vmatprep.subr.mxu0 0.0
    %1970 = vmatpush2.msra.mxu0 0.0
    %1971 = vmatprep.subr.mxu0 0.0
    %1972 = vmatpush2.msra.mxu0 0.0
    %1973 = vmatprep.subr.mxu0 0.0
    %1974 = vmatpush2.msra.mxu0 0.0
    %1975 = vmatprep.subr.mxu0 0.0
    %1976 = vmatpush2.msra.mxu0 0.0
    %1977 = vmatprep.subr.mxu0 0.0
    %1978 = vmatpush2.msra.mxu0 0.0
    %1979 = vmatprep.subr.mxu0 0.0
    %1980 = vmatpush2.msra.mxu0 0.0
    %1981 = vmatprep.subr.mxu0 0.0
    %1982 = vmatpush2.msra.mxu0 0.0
    %1983 = vmatprep.subr.mxu0 0.0
    %1984 = vmatpush2.msra.mxu0 0.0
    %1985 = vmatprep.subr.mxu0 0.0
    %1986 = vmatpush2.msra.mxu0 0.0
    %1987 = vmatprep.subr.mxu0 0.0
    %1988 = vmatpush2.msra.mxu0 0.0
    %1989 = vmatprep.subr.mxu0 0.0
    %1990 = vmatpush2.msra.mxu0 0.0
    %1991 = vmatprep.subr.mxu0 0.0
    %1992 = vmatpush2.msra.mxu0 0.0
    %1993 = vmatprep.subr.mxu0 0.0
    %1994 = vmatpush2.msra.mxu0 0.0
    %1995 = vmatprep.mubr.f32.mxu0 0.0
    %1996 = vmatmul.mubr.f32.gmra.mxu0 %v1929
    %v1997 = vpop.f32.mrf.mxu0
    %v1998 = vadd.f32 0.0, %v1997
    %v1999 = vpop.f32.mrf.mxu0
    %v2000 = vadd.f32 0.0, %v1999
    %2001 = vdwg.mxu0
    %2002 = vmatprep.subr.mxu0 0.0
    %2003 = vmatpush1.msra.mxu0 0.0
    %2004 = vmatprep.subr.mxu0 0.0
    %2005 = vmatpush1.msra.mxu0 0.0
    %2006 = vmatprep.subr.mxu0 0.0
    %2007 = vmatpush1.msra.mxu0 0.0
    %2008 = vmatprep.subr.mxu0 0.0
    %2009 = vmatpush1.msra.mxu0 0.0
    %2010 = vmatprep.subr.mxu0 0.0
    %2011 = vmatpush1.msra.mxu0 0.0
    %2012 = vmatprep.subr.mxu0 0.0
    %2013 = vmatpush1.msra.mxu0 0.0
    %2014 = vmatprep.subr.mxu0 0.0
    %2015 = vmatpush1.msra.mxu0 0.0
    %2016 = vmatprep.subr.mxu0 0.0
    %2017 = vmatpush1.msra.mxu0 0.0
    %2018 = vmatprep.subr.mxu0 0.0
    %2019 = vmatpush1.msra.mxu0 0.0
    %2020 = vmatprep.subr.mxu0 0.0
    %2021 = vmatpush1.msra.mxu0 0.0
    %2022 = vmatprep.subr.mxu0 0.0
    %2023 = vmatpush1.msra.mxu0 0.0
    %2024 = vmatprep.subr.mxu0 0.0
    %2025 = vmatpush1.msra.mxu0 0.0
    %2026 = vmatprep.subr.mxu0 0.0
    %2027 = vmatpush1.msra.mxu0 0.0
    %2028 = vmatprep.subr.mxu0 0.0
    %2029 = vmatpush1.msra.mxu0 0.0
    %2030 = vmatprep.subr.mxu0 %v1925
    %2031 = vmatpush1.msra.mxu0 %v1924
    %2032 = vmatprep.subr.mxu0 %v1921
    %2033 = vmatpush1.msra.mxu0 %v1920
    %2034 = vmatprep.subr.mxu0 0.0
    %2035 = vmatpush2.msra.mxu0 0.0
    %2036 = vmatprep.subr.mxu0 0.0
    %2037 = vmatpush2.msra.mxu0 0.0
    %2038 = vmatprep.subr.mxu0 0.0
    %2039 = vmatpush2.msra.mxu0 0.0
    %2040 = vmatprep.subr.mxu0 0.0
    %2041 = vmatpush2.msra.mxu0 0.0
    %2042 = vmatprep.subr.mxu0 0.0
    %2043 = vmatpush2.msra.mxu0 0.0
    %2044 = vmatprep.subr.mxu0 0.0
    %2045 = vmatpush2.msra.mxu0 0.0
    %2046 = vmatprep.subr.mxu0 0.0
    %2047 = vmatpush2.msra.mxu0 0.0
    %2048 = vmatprep.subr.mxu0 0.0
    %2049 = vmatpush2.msra.mxu0 0.0
    %2050 = vmatprep.subr.mxu0 0.0
    %2051 = vmatpush2.msra.mxu0 0.0
    %2052 = vmatprep.subr.mxu0 0.0
    %2053 = vmatpush2.msra.mxu0 0.0
    %2054 = vmatprep.subr.mxu0 0.0
    %2055 = vmatpush2.msra.mxu0 0.0
    %2056 = vmatprep.subr.mxu0 0.0
    %2057 = vmatpush2.msra.mxu0 0.0
    %2058 = vmatprep.subr.mxu0 0.0
    %2059 = vmatpush2.msra.mxu0 0.0
    %2060 = vmatprep.subr.mxu0 0.0
    %2061 = vmatpush2.msra.mxu0 0.0
    %2062 = vmatprep.subr.mxu0 0.0
    %2063 = vmatpush2.msra.mxu0 0.0
    %2064 = vmatprep.subr.mxu0 0.0
    %2065 = vmatpush2.msra.mxu0 0.0
    %2066 = vmatprep.mubr.f32.mxu0 0.0
    %2067 = vmatmul.mubr.f32.gmra.mxu0 %v1929
    %v2068 = vpop.f32.mrf.mxu0
    %v2069 = vadd.f32 0.0, %v2068
    %v2070 = vpop.f32.mrf.mxu0
    %v2071 = vadd.f32 0.0, %v2070
    %2072 = vdwg.mxu0
    %v2073 = vadd.f32 %v1866, %v1998
    %v2074 = vadd.f32 %v1867, %v2000
    %v2075 = vadd.f32 %v1868, %v2069
    %v2076 = vadd.f32 %v1869, %v2071
    %2077 = vrot.lane.b32.xlu0 %v477, 111
    %v2078 = vpop.permute.xlu0 %2077
    %2079 = vrot.lane.b32.xlu0 %v481, 111
    %v2080 = vpop.permute.xlu0 %2079
    %2081 = vrot.lane.b32.xlu0 %v478, 111
    %v2082 = vpop.permute.xlu0 %2081
    %2083 = vrot.lane.b32.xlu0 %v482, 111
    %v2084 = vpop.permute.xlu0 %2083
    %2085 = vrot.lane.b32.xlu0 %v479, 111
    %v2086 = vpop.permute.xlu0 %2085
    %2087 = vrot.lane.b32.xlu0 %v483, 111
    %v2088 = vpop.permute.xlu0 %2087
    %2089 = vrot.lane.b32.xlu0 %v480, 111
    %v2090 = vpop.permute.xlu0 %2089
    %2091 = vrot.lane.b32.xlu0 %v484, 111
    %v2092 = vpop.permute.xlu0 %2091
    %vm2093 = vcmp.lt.s32.totalorder %v502, 111
    %v2094 = vsel %vm2093, %v2086, %v2090
    %v2095 = vsel %vm2093, %v2088, %v2092
    %v2096 = vsel %vm2093, %v2082, %v2086
    %v2097 = vsel %vm2093, %v2084, %v2088
    %v2098 = vsel %vm2093, %v2078, %v2082
    %v2099 = vsel %vm2093, %v2080, %v2084
    %v2100 = vsel %vm2093, %v2090, %v2078
    %v2101 = vsel %vm2093, %v2092, %v2080
    %s2102 = scalar_lea.vmem [#allocation5], 32
    %v2103 = vld [vmem:[%s2102] ss:$8 sm:$0xf]
    %v2105 = vlaneseq
    %v2106 = vshrl.u32 %v2105, 7
    %v2107 = vsub.s32 0, %v2106
    %v2108 = vrot.slane %v2103, %v2107
    %v2109 = vlaneseq
    %v2110 = vshrl.u32 %v2109, 7
    %v2111 = vsub.s32 1, %v2110
    %v2112 = vrot.slane %v2103, %v2111
    %v2113 = vlaneseq
    %v2114 = vshrl.u32 %v2113, 7
    %v2115 = vsub.s32 2, %v2114
    %v2116 = vrot.slane %v2103, %v2115
    %v2117 = vlaneseq
    %v2118 = vshrl.u32 %v2117, 7
    %v2119 = vsub.s32 3, %v2118
    %v2120 = vrot.slane %v2103, %v2119
    %v2125 = vmul.f32 %v2098, %v2108
    %v2126 = vmul.f32 %v2096, %v2112
    %v2127 = vmul.f32 %v2094, %v2116
    %v2128 = vmul.f32 %v2100, %v2120
    %v2129 = vmul.f32 %v2099, %v2108
    %v2130 = vmul.f32 %v2097, %v2112
    %v2131 = vmul.f32 %v2095, %v2116
    %v2132 = vmul.f32 %v2101, %v2120
    %s2133 = scalar_lea.vmem [#allocation7], 64
    %v2134 = vld [vmem:[%s2133] sm:$0xff]
    %v2136 = vsel %vm308, %v2134, 0
    %2138 = vmatprep.subr.mxu0 0.0
    %2139 = vmatpush1.msra.mxu0 0.0
    %2140 = vmatprep.subr.mxu0 0.0
    %2141 = vmatpush1.msra.mxu0 0.0
    %2142 = vmatprep.subr.mxu0 0.0
    %2143 = vmatpush1.msra.mxu0 0.0
    %2144 = vmatprep.subr.mxu0 0.0
    %2145 = vmatpush1.msra.mxu0 0.0
    %2146 = vmatprep.subr.mxu0 0.0
    %2147 = vmatpush1.msra.mxu0 0.0
    %2148 = vmatprep.subr.mxu0 0.0
    %2149 = vmatpush1.msra.mxu0 0.0
    %2150 = vmatprep.subr.mxu0 0.0
    %2151 = vmatpush1.msra.mxu0 0.0
    %2152 = vmatprep.subr.mxu0 0.0
    %2153 = vmatpush1.msra.mxu0 0.0
    %2154 = vmatprep.subr.mxu0 0.0
    %2155 = vmatpush1.msra.mxu0 0.0
    %2156 = vmatprep.subr.mxu0 0.0
    %2157 = vmatpush1.msra.mxu0 0.0
    %2158 = vmatprep.subr.mxu0 0.0
    %2159 = vmatpush1.msra.mxu0 0.0
    %2160 = vmatprep.subr.mxu0 0.0
    %2161 = vmatpush1.msra.mxu0 0.0
    %2162 = vmatprep.subr.mxu0 0.0
    %2163 = vmatpush1.msra.mxu0 0.0
    %2164 = vmatprep.subr.mxu0 0.0
    %2165 = vmatpush1.msra.mxu0 0.0
    %2166 = vmatprep.subr.mxu0 %v2130
    %2167 = vmatpush1.msra.mxu0 %v2129
    %2168 = vmatprep.subr.mxu0 %v2126
    %2169 = vmatpush1.msra.mxu0 %v2125
    %2170 = vmatprep.subr.mxu0 0.0
    %2171 = vmatpush2.msra.mxu0 0.0
    %2172 = vmatprep.subr.mxu0 0.0
    %2173 = vmatpush2.msra.mxu0 0.0
    %2174 = vmatprep.subr.mxu0 0.0
    %2175 = vmatpush2.msra.mxu0 0.0
    %2176 = vmatprep.subr.mxu0 0.0
    %2177 = vmatpush2.msra.mxu0 0.0
    %2178 = vmatprep.subr.mxu0 0.0
    %2179 = vmatpush2.msra.mxu0 0.0
    %2180 = vmatprep.subr.mxu0 0.0
    %2181 = vmatpush2.msra.mxu0 0.0
    %2182 = vmatprep.subr.mxu0 0.0
    %2183 = vmatpush2.msra.mxu0 0.0
    %2184 = vmatprep.subr.mxu0 0.0
    %2185 = vmatpush2.msra.mxu0 0.0
    %2186 = vmatprep.subr.mxu0 0.0
    %2187 = vmatpush2.msra.mxu0 0.0
    %2188 = vmatprep.subr.mxu0 0.0
    %2189 = vmatpush2.msra.mxu0 0.0
    %2190 = vmatprep.subr.mxu0 0.0
    %2191 = vmatpush2.msra.mxu0 0.0
    %2192 = vmatprep.subr.mxu0 0.0
    %2193 = vmatpush2.msra.mxu0 0.0
    %2194 = vmatprep.subr.mxu0 0.0
    %2195 = vmatpush2.msra.mxu0 0.0
    %2196 = vmatprep.subr.mxu0 0.0
    %2197 = vmatpush2.msra.mxu0 0.0
    %2198 = vmatprep.subr.mxu0 0.0
    %2199 = vmatpush2.msra.mxu0 0.0
    %2200 = vmatprep.subr.mxu0 0.0
    %2201 = vmatpush2.msra.mxu0 0.0
    %2202 = vmatprep.mubr.f32.mxu0 0.0
    %2203 = vmatmul.mubr.f32.gmra.mxu0 %v2136
    %v2204 = vpop.f32.mrf.mxu0
    %v2205 = vadd.f32 0.0, %v2204
    %v2206 = vpop.f32.mrf.mxu0
    %v2207 = vadd.f32 0.0, %v2206
    %2208 = vdwg.mxu0
    %2209 = vmatprep.subr.mxu0 0.0
    %2210 = vmatpush1.msra.mxu0 0.0
    %2211 = vmatprep.subr.mxu0 0.0
    %2212 = vmatpush1.msra.mxu0 0.0
    %2213 = vmatprep.subr.mxu0 0.0
    %2214 = vmatpush1.msra.mxu0 0.0
    %2215 = vmatprep.subr.mxu0 0.0
    %2216 = vmatpush1.msra.mxu0 0.0
    %2217 = vmatprep.subr.mxu0 0.0
    %2218 = vmatpush1.msra.mxu0 0.0
    %2219 = vmatprep.subr.mxu0 0.0
    %2220 = vmatpush1.msra.mxu0 0.0
    %2221 = vmatprep.subr.mxu0 0.0
    %2222 = vmatpush1.msra.mxu0 0.0
    %2223 = vmatprep.subr.mxu0 0.0
    %2224 = vmatpush1.msra.mxu0 0.0
    %2225 = vmatprep.subr.mxu0 0.0
    %2226 = vmatpush1.msra.mxu0 0.0
    %2227 = vmatprep.subr.mxu0 0.0
    %2228 = vmatpush1.msra.mxu0 0.0
    %2229 = vmatprep.subr.mxu0 0.0
    %2230 = vmatpush1.msra.mxu0 0.0
    %2231 = vmatprep.subr.mxu0 0.0
    %2232 = vmatpush1.msra.mxu0 0.0
    %2233 = vmatprep.subr.mxu0 0.0
    %2234 = vmatpush1.msra.mxu0 0.0
    %2235 = vmatprep.subr.mxu0 0.0
    %2236 = vmatpush1.msra.mxu0 0.0
    %2237 = vmatprep.subr.mxu0 %v2132
    %2238 = vmatpush1.msra.mxu0 %v2131
    %2239 = vmatprep.subr.mxu0 %v2128
    %2240 = vmatpush1.msra.mxu0 %v2127
    %2241 = vmatprep.subr.mxu0 0.0
    %2242 = vmatpush2.msra.mxu0 0.0
    %2243 = vmatprep.subr.mxu0 0.0
    %2244 = vmatpush2.msra.mxu0 0.0
    %2245 = vmatprep.subr.mxu0 0.0
    %2246 = vmatpush2.msra.mxu0 0.0
    %2247 = vmatprep.subr.mxu0 0.0
    %2248 = vmatpush2.msra.mxu0 0.0
    %2249 = vmatprep.subr.mxu0 0.0
    %2250 = vmatpush2.msra.mxu0 0.0
    %2251 = vmatprep.subr.mxu0 0.0
    %2252 = vmatpush2.msra.mxu0 0.0
    %2253 = vmatprep.subr.mxu0 0.0
    %2254 = vmatpush2.msra.mxu0 0.0
    %2255 = vmatprep.subr.mxu0 0.0
    %2256 = vmatpush2.msra.mxu0 0.0
    %2257 = vmatprep.subr.mxu0 0.0
    %2258 = vmatpush2.msra.mxu0 0.0
    %2259 = vmatprep.subr.mxu0 0.0
    %2260 = vmatpush2.msra.mxu0 0.0
    %2261 = vmatprep.subr.mxu0 0.0
    %2262 = vmatpush2.msra.mxu0 0.0
    %2263 = vmatprep.subr.mxu0 0.0
    %2264 = vmatpush2.msra.mxu0 0.0
    %2265 = vmatprep.subr.mxu0 0.0
    %2266 = vmatpush2.msra.mxu0 0.0
    %2267 = vmatprep.subr.mxu0 0.0
    %2268 = vmatpush2.msra.mxu0 0.0
    %2269 = vmatprep.subr.mxu0 0.0
    %2270 = vmatpush2.msra.mxu0 0.0
    %2271 = vmatprep.subr.mxu0 0.0
    %2272 = vmatpush2.msra.mxu0 0.0
    %2273 = vmatprep.mubr.f32.mxu0 0.0
    %2274 = vmatmul.mubr.f32.gmra.mxu0 %v2136
    %v2275 = vpop.f32.mrf.mxu0
    %v2276 = vadd.f32 0.0, %v2275
    %v2277 = vpop.f32.mrf.mxu0
    %v2278 = vadd.f32 0.0, %v2277
    %2279 = vdwg.mxu0
    %v2280 = vadd.f32 %v2073, %v2205
    %v2281 = vadd.f32 %v2074, %v2207
    %v2282 = vadd.f32 %v2075, %v2276
    %v2283 = vadd.f32 %v2076, %v2278
    %v2284 = vld [vmem:[%s7] sm:$0xff]
    %2286 = vset.pattern.permute.xlu0 0
    %2287 = vperm.xlu0 %2286, %v2284
    %v2288 = vpop.permute.xlu0 %2287
    %v2290 = vadd.f32 %v2280, %v2288
    %v2291 = vadd.f32 %v2281, %v2288
    %v2292 = vadd.f32 %v2282, %v2288
    %v2293 = vadd.f32 %v2283, %v2288
    %2294 = vst [vmem:[#allocation8] sm:$0xff] %v2290
    %2295 = vst [vmem:[#allocation8 + $0x8] sm:$0xff] %v2291
    %2296 = vst [vmem:[#allocation8 + $0x10] sm:$0xff] %v2292
    %2297 = vst [vmem:[#allocation8 + $0x18] sm:$0xff] %v2293
    // Predicated region
    $region46: #{tpu_custom_call.1} parent=1 // pred_check
      _
    $region47: #{tpu_custom_call.1} parent=1 // pred_check_branch
      %2299 = sbr.rel (0) target = $region49
    $region48: #{tpu_custom_call.1} parent=1 // pred_region
      %s2301 = ssub.s32 512, 512
      %2302 = vsyncadd [#allocation4], %s2301
      %s2304 = sshll.u32 [#allocation8], 4
      %s2305 = int_to_ptr.vmem [resolvable:$true] %s2304
      %2307 = dma.vmem_to_hbm [thread:$0]  %s2305, 512, %s8, [#allocation4]
    $region49: #{tpu_custom_call.1} parent=1 // pred_fallthru
      _
    // Predicated region
    $region50: #{tpu_custom_call.1} parent=1 // pred_check
      _
    $region51: #{tpu_custom_call.1} parent=1 // pred_check_branch
      %2309 = sbr.rel (0) target = $region53
    $region52: #{tpu_custom_call.1} parent=1 // pred_region
      %2310 = dma.done [#allocation4], 512
    $region53: #{tpu_custom_call.1} parent=1 // pred_fallthru
      _
    %2311 = vsyncpa [#allocation3], 1
    %2312 = vsyncpa [#allocation6], 1
    %2313 = vsyncpa [#allocation4], 1

</llo_original>
